<compile_context>
chip_gen: v7x
topology: tpu7x:2x2x1
jax: 0.10.0
libtpu: 0.0.40
codegen_flags: <defaults>
</compile_context>

<pallas_src>
import math

import jax
import jax.numpy as jnp
from jax.experimental import pallas as pl
from jax.experimental.pallas import tpu as pltpu


# ----------------------------------------------------------------------------
# Kernel: one (batch b, time-tile t) step, everything in transposed layout.
#   x_ref    : (Din, TILE_T)   input slab (native layout of `inputs`)
#   mask_ref : (1,   TILE_T)   lane-dense mask row
#   pe_ref   : (H,   TILE_T)   positional-encoding slab (shared across batch)
#   w1_ref   : (H, Din), b1_ref: (H, 1), w2_ref: (C, H), b2_ref: (C, 1)
#   in_ref   : (C, TILE_T)     in_scores^T tile (lane-dense store)
#   out_ref  : (C, 1)          per-batch accumulator (resident across t)
# ----------------------------------------------------------------------------
def _pdu_kernel(x_ref, mask_ref, pe_ref, w1_ref, b1_ref, w2_ref, b2_ref,
                in_ref, out_ref):
    t = pl.program_id(1)

    # fc1 (transposed): (H, Din) @ (Din, TILE_T) -> (H, TILE_T), f32 MXU acc.
    h = jnp.dot(w1_ref[...], x_ref[...], preferred_element_type=jnp.float32)
    h = jnp.maximum(h + b1_ref[...], 0.0)          # bias + ReLU (VPU)
    h = h + pe_ref[...]                            # positional encoding

    # fc2 (transposed): (C, H) @ (H, TILE_T) -> (C, TILE_T)
    z = jnp.dot(w2_ref[...], h, preferred_element_type=jnp.float32)
    z = z + b2_ref[...]

    s = z * mask_ref[...]                          # (1, TILE_T) broadcasts over C rows
    in_ref[...] = s                                # lane-dense (C x TILE_T) store

    # Per-batch sum over time: accumulate into the output block, which stays
    # VMEM-resident across the innermost "arbitrary" time axis.
    @pl.when(t == 0)
    def _():
        out_ref[...] = jnp.zeros_like(out_ref)
    out_ref[...] += jnp.sum(s, axis=1, keepdims=True)   # (C, 1), XLU lane reduce


def _positional_encoding(seq_len, hidden):
    position = jnp.arange(seq_len, dtype=jnp.float32)[:, None]                # (T, 1)
    div_term = jnp.exp(jnp.arange(0, hidden, 2, dtype=jnp.float32)
                       * (-math.log(10000.0) / hidden))                       # (H/2,)
    pe = jnp.zeros((seq_len, hidden), dtype=jnp.float32)
    pe = pe.at[:, 0::2].set(jnp.sin(position * div_term))
    pe = pe.at[:, 1::2].set(jnp.cos(position * div_term))
    return pe                                                                  # (T, H)


def pdu_forward(inputs, input_masks, w1, b1, w2, b2, *, tile_t=256):
    """inputs: (B, input_size, T) f32; input_masks: (B, T) f32.

    Returns (in_scores (B, T, C), out_scores (B, C)) exactly like the PyTorch
    module's forward (pdmlp branch).
    """
    B, d_in, T = inputs.shape
    H = w1.shape[0]
    C = w2.shape[0]

    # Tile the time axis. TILE_T is a multiple of 256 (v7x MXU width, and of 128
    # for v5e); if T is small a single full-extent tile is used instead.
    if T <= tile_t:
        tile_t = T
    num_t = pl.cdiv(T, tile_t)
    t_pad = num_t * tile_t

    # ---- glue: layout plumbing only (all small / zero-copy-ish) -----------
    x = inputs.astype(jnp.float32)                         # native (B, Din, T)
    mask = input_masks.astype(jnp.float32).reshape(B, 1, T)
    if t_pad != T:
        x = jnp.pad(x, ((0, 0), (0, 0), (0, t_pad - T)))
        mask = jnp.pad(mask, ((0, 0), (0, 0), (0, t_pad - T)))  # zeros -> no effect
    pe_t = _positional_encoding(t_pad, H).T                # (H, T_pad), batch-shared
    b1c = b1.reshape(H, 1)
    b2c = b2.reshape(C, 1)

    const = lambda shape: pl.BlockSpec(shape, lambda b, t: tuple(0 for _ in shape))

    in_t, out3 = pl.pallas_call(
        _pdu_kernel,
        out_shape=(jax.ShapeDtypeStruct((B, C, t_pad), jnp.float32),
                   jax.ShapeDtypeStruct((B, C, 1), jnp.float32)),
        grid=(B, num_t),
        in_specs=[
            pl.BlockSpec((None, d_in, tile_t), lambda b, t: (b, 0, t)),  # x^T tile
            pl.BlockSpec((None, 1, tile_t),    lambda b, t: (b, 0, t)),  # mask row
            pl.BlockSpec((H, tile_t),          lambda b, t: (0, t)),     # pe^T tile
            const((H, d_in)),                                            # W1
            const((H, 1)),                                               # b1
            const((C, H)),                                               # W2
            const((C, 1)),                                               # b2
        ],
        out_specs=(
            pl.BlockSpec((None, C, tile_t), lambda b, t: (b, 0, t)),     # in_scores^T
            pl.BlockSpec((None, C, 1),      lambda b, t: (b, 0, 0)),     # out_scores acc
        ),
        compiler_params=pltpu.CompilerParams(
            dimension_semantics=("parallel", "arbitrary")),
    )(x, mask, pe_t, w1, b1c, w2, b2c)

    in_scores = jnp.transpose(in_t[:, :, :T], (0, 2, 1))   # (B, T, C)
    out_scores = out3[:, :, 0]                              # (B, C)
    return in_scores, out_scores


# ----------------------------------------------------------------------------
# Pure-JAX reference (mirrors the PyTorch forward) for a correctness check.
# ----------------------------------------------------------------------------
def _reference(inputs, input_masks, w1, b1, w2, b2):
    B, d_in, T = inputs.shape
    H = w1.shape[0]
    x = jnp.transpose(inputs, (0, 2, 1))                    # (B, T, Din)
    h = jnp.maximum(x @ w1.T + b1, 0.0)                     # fc1 + relu
    h = h + _positional_encoding(T, H)[None]                # positional encoding
    z = h @ w2.T + b2                                       # fc2
    in_scores = z * input_masks[..., None]                  # permutes cancel
    out_scores = in_scores.sum(axis=1)
    return in_scores, out_scores


if __name__ == "__main__":
    # Small shapes consistent with the module: inputs (B, input_size, T), masks (B, T).
    # T=384 exercises time tiling (2 tiles of 256 with zero-padding of the tail).
    B, INPUT_SIZE, T = 2, 32, 384
    OUTPUT_SIZE = 8
    HIDDEN_SIZE = 512  # PDMLP default hidden_size

    key = jax.random.PRNGKey(0)
    k_x, k_w1, k_b1, k_w2, k_b2, k_m = jax.random.split(key, 6)

    inputs = jax.random.normal(k_x, (B, INPUT_SIZE, T), dtype=jnp.float32)
    input_masks = (jax.random.uniform(k_m, (B, T)) > 0.2).astype(jnp.float32)

    # nn.Linear-style uniform init.
    bound1 = 1.0 / math.sqrt(INPUT_SIZE)
    w1 = jax.random.uniform(k_w1, (HIDDEN_SIZE, INPUT_SIZE),
                            minval=-bound1, maxval=bound1, dtype=jnp.float32)
    b1 = jax.random.uniform(k_b1, (HIDDEN_SIZE,),
                            minval=-bound1, maxval=bound1, dtype=jnp.float32)
    bound2 = 1.0 / math.sqrt(HIDDEN_SIZE)
    w2 = jax.random.uniform(k_w2, (OUTPUT_SIZE, HIDDEN_SIZE),
                            minval=-bound2, maxval=bound2, dtype=jnp.float32)
    b2 = jax.random.uniform(k_b2, (OUTPUT_SIZE,),
                            minval=-bound2, maxval=bound2, dtype=jnp.float32)

    in_scores, out_scores = pdu_forward(inputs, input_masks, w1, b1, w2, b2)
    jax.block_until_ready((in_scores, out_scores))

    ref_in, ref_out = _reference(inputs, input_masks, w1, b1, w2, b2)
    assert in_scores.shape == (B, T, OUTPUT_SIZE)
    assert out_scores.shape == (B, OUTPUT_SIZE)
    assert jnp.allclose(in_scores, ref_in, atol=2e-4, rtol=2e-4), "in_scores mismatch"
    assert jnp.allclose(out_scores, ref_out, atol=2e-4, rtol=2e-4), "out_scores mismatch"

    print("KERNEL_OK")
</pallas_src>

<mosaic_0001>
module attributes {stable_mosaic.version = 11 : i64} {
  func.func @_pdu_kernel(%arg0: i32, %arg1: i32, %arg2: memref<1x32x256xf32, #tpu.memory_space<vmem>>, %arg3: memref<1x1x256xf32, #tpu.memory_space<vmem>>, %arg4: memref<512x256xf32, #tpu.memory_space<vmem>>, %arg5: memref<512x32xf32, #tpu.memory_space<vmem>>, %arg6: memref<512x1xf32, #tpu.memory_space<vmem>>, %arg7: memref<8x512xf32, #tpu.memory_space<vmem>>, %arg8: memref<8x1xf32, #tpu.memory_space<vmem>>, %arg9: memref<1x8x256xf32, #tpu.memory_space<vmem>>, %arg10: memref<1x8x1xf32, #tpu.memory_space<vmem>>) attributes {dimension_semantics = [#tpu.dimension_semantics<parallel>, #tpu.dimension_semantics<arbitrary>], iteration_bounds = array<i64: 2, 2>, scalar_prefetch = 0 : i64, scratch_operands = 0 : i64, tpu.core_type = #tpu.core_type<tc>, window_params = [{transform_indices = @transform_0, window_bounds = array<i64: 1, 32, 256>}, {transform_indices = @transform_1, window_bounds = array<i64: 1, 1, 256>}, {transform_indices = @transform_2, window_bounds = array<i64: 512, 256>}, {pipeline_mode = #tpu.pipeline_mode<synchronous>, transform_indices = @transform_3, window_bounds = array<i64: 512, 32>}, {pipeline_mode = #tpu.pipeline_mode<synchronous>, transform_indices = @transform_4, window_bounds = array<i64: 512, 1>}, {pipeline_mode = #tpu.pipeline_mode<synchronous>, transform_indices = @transform_5, window_bounds = array<i64: 8, 512>}, {pipeline_mode = #tpu.pipeline_mode<synchronous>, transform_indices = @transform_6, window_bounds = array<i64: 8, 1>}, {transform_indices = @transform_7, window_bounds = array<i64: 1, 8, 256>}, {transform_indices = @transform_8, window_bounds = array<i64: 1, 8, 1>}]} {
    %c0 = arith.constant 0 : index
    %c0_0 = arith.constant 0 : index
    %0 = vector.load %arg5[%c0, %c0_0] : memref<512x32xf32, #tpu.memory_space<vmem>>, vector<512x32xf32>
    %c0_1 = arith.constant 0 : index
    %c0_2 = arith.constant 0 : index
    %c0_3 = arith.constant 0 : index
    %1 = vector.load %arg2[%c0_1, %c0_2, %c0_3] : memref<1x32x256xf32, #tpu.memory_space<vmem>>, vector<1x32x256xf32>
    %2 = vector.shape_cast %1 : vector<1x32x256xf32> to vector<32x256xf32>
    %cst = arith.constant dense<0.000000e+00> : vector<512x256xf32>
    %3 = tpu.matmul %0, %2, %cst {dimension_numbers = #tpu.dot_dimension_numbers<[1], [0], [0], [1], [0, 0, 1, 1], [], []>} : vector<512x32xf32>, vector<32x256xf32>, vector<512x256xf32> -> vector<512x256xf32>
    %c0_4 = arith.constant 0 : index
    %c0_5 = arith.constant 0 : index
    %4 = vector.load %arg6[%c0_4, %c0_5] : memref<512x1xf32, #tpu.memory_space<vmem>>, vector<512x1xf32>
    %5 = vector.broadcast %4 : vector<512x1xf32> to vector<512x256xf32>
    %6 = arith.addf %3, %5 : vector<512x256xf32>
    %cst_6 = arith.constant 0.000000e+00 : f32
    %7 = vector.broadcast %cst_6 : f32 to vector<512x256xf32>
    %8 = arith.maximumf %6, %7 : vector<512x256xf32>
    %c0_7 = arith.constant 0 : index
    %c0_8 = arith.constant 0 : index
    %9 = vector.load %arg4[%c0_7, %c0_8] : memref<512x256xf32, #tpu.memory_space<vmem>>, vector<512x256xf32>
    %10 = arith.addf %8, %9 : vector<512x256xf32>
    %c0_9 = arith.constant 0 : index
    %c0_10 = arith.constant 0 : index
    %11 = vector.load %arg7[%c0_9, %c0_10] : memref<8x512xf32, #tpu.memory_space<vmem>>, vector<8x512xf32>
    %cst_11 = arith.constant dense<0.000000e+00> : vector<8x256xf32>
    %12 = tpu.matmul %11, %10, %cst_11 {dimension_numbers = #tpu.dot_dimension_numbers<[1], [0], [0], [1], [0, 0, 1, 1], [], []>} : vector<8x512xf32>, vector<512x256xf32>, vector<8x256xf32> -> vector<8x256xf32>
    %c0_12 = arith.constant 0 : index
    %c0_13 = arith.constant 0 : index
    %13 = vector.load %arg8[%c0_12, %c0_13] : memref<8x1xf32, #tpu.memory_space<vmem>>, vector<8x1xf32>
    %14 = vector.broadcast %13 : vector<8x1xf32> to vector<8x256xf32>
    %15 = arith.addf %12, %14 : vector<8x256xf32>
    %c0_14 = arith.constant 0 : index
    %c0_15 = arith.constant 0 : index
    %c0_16 = arith.constant 0 : index
    %16 = vector.load %arg3[%c0_14, %c0_15, %c0_16] : memref<1x1x256xf32, #tpu.memory_space<vmem>>, vector<1x1x256xf32>
    %17 = vector.shape_cast %16 : vector<1x1x256xf32> to vector<1x256xf32>
    %18 = vector.broadcast %17 : vector<1x256xf32> to vector<8x256xf32>
    %19 = arith.mulf %15, %18 : vector<8x256xf32>
    %c0_17 = arith.constant 0 : index
    %c0_18 = arith.constant 0 : index
    %c0_19 = arith.constant 0 : index
    %20 = vector.load %arg9[%c0_17, %c0_18, %c0_19] : memref<1x8x256xf32, #tpu.memory_space<vmem>>, vector<1x8x256xf32>
    %21 = vector.shape_cast %20 : vector<1x8x256xf32> to vector<8x256xf32>
    %22 = vector.shape_cast %19 : vector<8x256xf32> to vector<1x8x256xf32>
    tpu.vector_store %arg9[%c0_17, %c0_18, %c0_19], %22 {strides = array<i32>} : memref<1x8x256xf32, #tpu.memory_space<vmem>>, vector<1x8x256xf32>,
    %c0_i32 = arith.constant 0 : i32
    %23 = arith.cmpi eq, %arg1, %c0_i32 : i32
    %24 = arith.extui %23 : i1 to i32
    %c0_i32_20 = arith.constant 0 : i32
    %25 = arith.cmpi ne, %24, %c0_i32_20 : i32
    scf.if %25 {
      %cst_28 = arith.constant 0.000000e+00 : f32
      %34 = vector.broadcast %cst_28 : f32 to vector<8x1xf32>
      %c0_29 = arith.constant 0 : index
      %c0_30 = arith.constant 0 : index
      %c0_31 = arith.constant 0 : index
      %35 = vector.load %arg10[%c0_29, %c0_30, %c0_31] : memref<1x8x1xf32, #tpu.memory_space<vmem>>, vector<1x8x1xf32>
      %36 = vector.shape_cast %35 : vector<1x8x1xf32> to vector<8x1xf32>
      %37 = vector.shape_cast %34 : vector<8x1xf32> to vector<1x8x1xf32>
      tpu.vector_store %arg10[%c0_29, %c0_30, %c0_31], %37 {strides = array<i32>} : memref<1x8x1xf32, #tpu.memory_space<vmem>>, vector<1x8x1xf32>,
    } else {
    }
    %c0_21 = arith.constant 0 : index
    %c0_22 = arith.constant 0 : index
    %c0_23 = arith.constant 0 : index
    %26 = vector.load %arg10[%c0_21, %c0_22, %c0_23] : memref<1x8x1xf32, #tpu.memory_space<vmem>>, vector<1x8x1xf32>
    %27 = vector.shape_cast %26 : vector<1x8x1xf32> to vector<8x1xf32>
    %cst_24 = arith.constant dense<0.000000e+00> : vector<8xf32>
    %28 = vector.multi_reduction <add>, %19, %cst_24 [1] : vector<8x256xf32> to vector<8xf32>
    %29 = vector.shape_cast %28 : vector<8xf32> to vector<8x1xf32>
    %30 = arith.addf %27, %29 : vector<8x1xf32>
    %c0_25 = arith.constant 0 : index
    %c0_26 = arith.constant 0 : index
    %c0_27 = arith.constant 0 : index
    %31 = vector.load %arg10[%c0_25, %c0_26, %c0_27] : memref<1x8x1xf32, #tpu.memory_space<vmem>>, vector<1x8x1xf32>
    %32 = vector.shape_cast %31 : vector<1x8x1xf32> to vector<8x1xf32>
    %33 = vector.shape_cast %30 : vector<8x1xf32> to vector<1x8x1xf32>
    tpu.vector_store %arg10[%c0_25, %c0_26, %c0_27], %33 {strides = array<i32>} : memref<1x8x1xf32, #tpu.memory_space<vmem>>, vector<1x8x1xf32>,
    return
  }
  func.func @transform_0(%arg0: i32, %arg1: i32) -> (i32, i32, i32) {
    %c0_i32 = arith.constant 0 : i32
    %c0_i32_0 = arith.constant 0 : i32
    return %arg0, %c0_i32, %arg1 : i32, i32, i32
  }
  func.func @transform_1(%arg0: i32, %arg1: i32) -> (i32, i32, i32) {
    %c0_i32 = arith.constant 0 : i32
    %c0_i32_0 = arith.constant 0 : i32
    return %arg0, %c0_i32, %arg1 : i32, i32, i32
  }
  func.func @transform_2(%arg0: i32, %arg1: i32) -> (i32, i32) {
    %c0_i32 = arith.constant 0 : i32
    %c0_i32_0 = arith.constant 0 : i32
    return %c0_i32, %arg1 : i32, i32
  }
  func.func @transform_3(%arg0: i32, %arg1: i32) -> (i32, i32) {
    %c0_i32 = arith.constant 0 : i32
    %c0_i32_0 = arith.constant 0 : i32
    %c0_i32_1 = arith.constant 0 : i32
    return %c0_i32, %c0_i32_0 : i32, i32
  }
  func.func @transform_4(%arg0: i32, %arg1: i32) -> (i32, i32) {
    %c0_i32 = arith.constant 0 : i32
    %c0_i32_0 = arith.constant 0 : i32
    %c0_i32_1 = arith.constant 0 : i32
    return %c0_i32, %c0_i32_0 : i32, i32
  }
  func.func @transform_5(%arg0: i32, %arg1: i32) -> (i32, i32) {
    %c0_i32 = arith.constant 0 : i32
    %c0_i32_0 = arith.constant 0 : i32
    %c0_i32_1 = arith.constant 0 : i32
    return %c0_i32, %c0_i32_0 : i32, i32
  }
  func.func @transform_6(%arg0: i32, %arg1: i32) -> (i32, i32) {
    %c0_i32 = arith.constant 0 : i32
    %c0_i32_0 = arith.constant 0 : i32
    %c0_i32_1 = arith.constant 0 : i32
    return %c0_i32, %c0_i32_0 : i32, i32
  }
  func.func @transform_7(%arg0: i32, %arg1: i32) -> (i32, i32, i32) {
    %c0_i32 = arith.constant 0 : i32
    %c0_i32_0 = arith.constant 0 : i32
    return %arg0, %c0_i32, %arg1 : i32, i32, i32
  }
  func.func @transform_8(%arg0: i32, %arg1: i32) -> (i32, i32, i32) {
    %c0_i32 = arith.constant 0 : i32
    %c0_i32_0 = arith.constant 0 : i32
    %c0_i32_1 = arith.constant 0 : i32
    return %arg0, %c0_i32, %c0_i32_0 : i32, i32, i32
  }
}

</mosaic_0001>

<llo_original>
// kernel: tpu_custom_call.1
$region0: #{tpu_custom_call.1}
  #allocation0 [shape = 'u32[]', space=smem, size = 0x4, offset = 0x4, fixed_abs, tag = 'smem constant byte address 0x4 - core index']
  #allocation1 [shape = 'u32[144,128]{1,0:T(1,128)}', space=vmem, size = 0x12000, scoped, tag = 'internal scratch']
  %s0 = inlined_call_operand.vmem [shape: f32[2,32,512], index: 0, kind: input, shape index: {}]
  %s1 = inlined_call_operand.vmem [shape: f32[2,1,512], index: 1, kind: input, shape index: {}]
  %s2 = inlined_call_operand.hbm [shape: f32[512,512], index: 2, kind: input, shape index: {}]
  %s3 = inlined_call_operand.vmem [shape: f32[512,32], index: 3, kind: input, shape index: {}]
  %s4 = inlined_call_operand.vmem [shape: f32[512,1], index: 4, kind: input, shape index: {}]
  %s5 = inlined_call_operand.vmem [shape: f32[8,512], index: 5, kind: input, shape index: {}]
  %s6 = inlined_call_operand.vmem [shape: f32[8,1], index: 6, kind: input, shape index: {}]
  %s7 = inlined_call_operand.hbm [shape: f32[2,8,512], index: 7, kind: output, shape index: {0}]
  %s8 = inlined_call_operand.vmem [shape: f32[2,8,1], index: 8, kind: output, shape index: {1}]
  %9 = xla_tuple %s7, %s8
  %s10 = sld [smem:[#allocation0]]
  $region100: #{tpu_custom_call.1} parent=0
    _
  %s12 = ssub.s32 1, %s10
  %s13 = scalar_select 0, %s12, %s10
  $region1: #{tpu_custom_call.1} parent=0
    #allocation2 [shape = 'u8[65536]{0}', space=vmem, size = 0x10000, scoped, tag = 'input window, operand 0']
    #allocation3 [shape = 'u8[1048576]{0}', space=vmem, size = 0x100000, scoped, tag = 'input window, operand 2']
    #allocation4 [shape = 's32[2]{0}', space=sflag, size = 0x8, scoped, tag = 'scoped memory for tpu_custom_call.1']
    #allocation5 [shape = 's32[2]{0}', space=sflag, size = 0x8, scoped, tag = 'scoped memory for tpu_custom_call.1']
    #allocation6 [shape = 'u8[16384]{0}', space=vmem, size = 0x4000, scoped, tag = 'output window, operand 0']
    %14 = vsyncpa [#allocation4], 0
    %s15 = scalar_lea.sflag [#allocation4], 1
    %16 = vsyncpa %s15, 0
    %17 = vsyncpa [#allocation5], 0
    %s18 = scalar_lea.sflag [#allocation5], 1
    %19 = vsyncpa %s18, 0
    loop: start=0, step=1, limit=6
    $region2: #{tpu_custom_call.1} parent=1 // loop_pre_header
      _
    $region3: #{tpu_custom_call.1} parent=1 // loop_header
      %s21 = sphi 0, %s25
      %p22 = scmp.ge.s32.totalorder %s21, 6
      %s28 = sphi 0, %s40
      %s29 = sphi 0, %s36
      %s30 = sphi 0, %s28
      %s31 = sphi 0, %s29
      %s32 = sphi 0, %s30
      %s33 = sphi 0, %s31
      %s45 = sphi 0, %s47
      %s48 = sphi 0, %s45
      %s49 = sphi 0, %s48
      %s65 = sphi 0, %s49
      %s73 = sphi 0, %s75
      %s76 = sphi 0, %s73
      %s77 = sphi 0, %s76
      %s93 = sphi 0, %s77
      %s99 = sphi 0, %s101
      %s102 = sphi 0, %s99
      %s103 = sphi 0, %s102
      %s119 = sphi 0, %s103
      %s123 = sphi 0, %s123
      %s125 = sphi 0, %s123
      %s126 = sphi 0, %s125
      %s140 = sphi 0, %s126
      %s144 = sphi 0, %s144
      %s146 = sphi 0, %s144
      %s147 = sphi 0, %s146
      %s161 = sphi 0, %s147
      %s165 = sphi 0, %s165
      %s167 = sphi 0, %s165
      %s168 = sphi 0, %s167
      %s182 = sphi 0, %s168
      %s186 = sphi 0, %s186
      %s188 = sphi 0, %s186
      %s189 = sphi 0, %s188
      %s203 = sphi 0, %s189
      %s211 = sphi 0, %s213
      %s214 = sphi 0, %s211
      %s215 = sphi 0, %s214
      %s231 = sphi 0, %s215
      %s237 = sphi 0, %s239
      %s240 = sphi 0, %s237
      %s241 = sphi 0, %s240
      %s257 = sphi 0, %s241
    $region4: #{tpu_custom_call.1} parent=1 // loop_header_branch
      %24 = sbr.rel (%p22) target = $region8
    $region5: #{tpu_custom_call.1} parent=1 // loop_body
      %s26 = ssub.s32 %s21, 1
      %s27 = ssub.s32 %s21, 2
      %s34 = sadd.s32 1, %s29
      %p35 = scmp.ge.s32.totalorder %s34, 2
      %s36 = scalar_select %p35, 0, %s34
      %s37 = sadd.s32 1, %s28
      %s38 = scalar_select %p35, %s37, %s28
      %p39 = scmp.ge.s32.totalorder %s38, 2
      %s40 = scalar_select %p39, 0, %s38
      %s41 = ssub.s32 %s28, %s40
      %s42 = ssub.s32 %s29, %s36
      %s43 = sor.u32 %s41, %s42
      %p44 = scmp.eq.s32.totalorder %s43, 0
      %s46 = sadd.s32 %s45, 1
      %s47 = scalar_select %p44, %s45, %s46
      %p50 = pneg %p44
      %p51 = scmp.eq.s32.totalorder %s21, 3
      %p52 = por %p50, %p51
      %p53 = scmp.ne.s32.totalorder %s45, %s48
      %p54 = scmp.eq.s32.totalorder %s21, 0
      %p55 = por %p53, %p54
      %p56 = scmp.ne.s32.totalorder %s45, %s48
      %p57 = scmp.eq.s32.totalorder %s26, 3
      %p58 = por %p56, %p57
      %p59 = scmp.ne.s32.totalorder %s48, %s49
      %p60 = scmp.eq.s32.totalorder %s26, 0
      %p61 = por %p59, %p60
      %p62 = scmp.ne.s32.totalorder %s48, %s49
      %p63 = scmp.eq.s32.totalorder %s27, 3
      %p64 = por %p62, %p63
      %p66 = scmp.ne.s32.totalorder %s49, %s65
      %p67 = scmp.eq.s32.totalorder %s27, 0
      %p68 = por %p66, %p67
      %s69 = ssub.s32 %s28, %s40
      %s70 = ssub.s32 %s29, %s36
      %s71 = sor.u32 %s69, %s70
      %p72 = scmp.eq.s32.totalorder %s71, 0
      %s74 = sadd.s32 %s73, 1
      %s75 = scalar_select %p72, %s73, %s74
      %p78 = pneg %p72
      %p79 = scmp.eq.s32.totalorder %s21, 3
      %p80 = por %p78, %p79
      %p81 = scmp.ne.s32.totalorder %s73, %s76
      %p82 = scmp.eq.s32.totalorder %s21, 0
      %p83 = por %p81, %p82
      %p84 = scmp.ne.s32.totalorder %s73, %s76
      %p85 = scmp.eq.s32.totalorder %s26, 3
      %p86 = por %p84, %p85
      %p87 = scmp.ne.s32.totalorder %s76, %s77
      %p88 = scmp.eq.s32.totalorder %s26, 0
      %p89 = por %p87, %p88
      %p90 = scmp.ne.s32.totalorder %s76, %s77
      %p91 = scmp.eq.s32.totalorder %s27, 3
      %p92 = por %p90, %p91
      %p94 = scmp.ne.s32.totalorder %s77, %s93
      %p95 = scmp.eq.s32.totalorder %s27, 0
      %p96 = por %p94, %p95
      %s97 = ssub.s32 %s29, %s36
      %p98 = scmp.eq.s32.totalorder %s97, 0
      %s100 = sadd.s32 %s99, 1
      %s101 = scalar_select %p98, %s99, %s100
      %p104 = pneg %p98
      %p105 = scmp.eq.s32.totalorder %s21, 3
      %p106 = por %p104, %p105
      %p107 = scmp.ne.s32.totalorder %s99, %s102
      %p108 = scmp.eq.s32.totalorder %s21, 0
      %p109 = por %p107, %p108
      %p110 = scmp.ne.s32.totalorder %s99, %s102
      %p111 = scmp.eq.s32.totalorder %s26, 3
      %p112 = por %p110, %p111
      %p113 = scmp.ne.s32.totalorder %s102, %s103
      %p114 = scmp.eq.s32.totalorder %s26, 0
      %p115 = por %p113, %p114
      %p116 = scmp.ne.s32.totalorder %s102, %s103
      %p117 = scmp.eq.s32.totalorder %s27, 3
      %p118 = por %p116, %p117
      %p120 = scmp.ne.s32.totalorder %s103, %s119
      %p121 = scmp.eq.s32.totalorder %s27, 0
      %p122 = por %p120, %p121
      %s124 = sadd.s32 %s123, 1
      %p127 = scmp.eq.s32.totalorder %s21, 3
      %p128 = scmp.ne.s32.totalorder %s123, %s125
      %p129 = scmp.eq.s32.totalorder %s21, 0
      %p130 = por %p128, %p129
      %p131 = scmp.ne.s32.totalorder %s123, %s125
      %p132 = scmp.eq.s32.totalorder %s26, 3
      %p133 = por %p131, %p132
      %p134 = scmp.ne.s32.totalorder %s125, %s126
      %p135 = scmp.eq.s32.totalorder %s26, 0
      %p136 = por %p134, %p135
      %p137 = scmp.ne.s32.totalorder %s125, %s126
      %p138 = scmp.eq.s32.totalorder %s27, 3
      %p139 = por %p137, %p138
      %p141 = scmp.ne.s32.totalorder %s126, %s140
      %p142 = scmp.eq.s32.totalorder %s27, 0
      %p143 = por %p141, %p142
      %s145 = sadd.s32 %s144, 1
      %p148 = scmp.eq.s32.totalorder %s21, 3
      %p149 = scmp.ne.s32.totalorder %s144, %s146
      %p150 = scmp.eq.s32.totalorder %s21, 0
      %p151 = por %p149, %p150
      %p152 = scmp.ne.s32.totalorder %s144, %s146
      %p153 = scmp.eq.s32.totalorder %s26, 3
      %p154 = por %p152, %p153
      %p155 = scmp.ne.s32.totalorder %s146, %s147
      %p156 = scmp.eq.s32.totalorder %s26, 0
      %p157 = por %p155, %p156
      %p158 = scmp.ne.s32.totalorder %s146, %s147
      %p159 = scmp.eq.s32.totalorder %s27, 3
      %p160 = por %p158, %p159
      %p162 = scmp.ne.s32.totalorder %s147, %s161
      %p163 = scmp.eq.s32.totalorder %s27, 0
      %p164 = por %p162, %p163
      %s166 = sadd.s32 %s165, 1
      %p169 = scmp.eq.s32.totalorder %s21, 3
      %p170 = scmp.ne.s32.totalorder %s165, %s167
      %p171 = scmp.eq.s32.totalorder %s21, 0
      %p172 = por %p170, %p171
      %p173 = scmp.ne.s32.totalorder %s165, %s167
      %p174 = scmp.eq.s32.totalorder %s26, 3
      %p175 = por %p173, %p174
      %p176 = scmp.ne.s32.totalorder %s167, %s168
      %p177 = scmp.eq.s32.totalorder %s26, 0
      %p178 = por %p176, %p177
      %p179 = scmp.ne.s32.totalorder %s167, %s168
      %p180 = scmp.eq.s32.totalorder %s27, 3
      %p181 = por %p179, %p180
      %p183 = scmp.ne.s32.totalorder %s168, %s182
      %p184 = scmp.eq.s32.totalorder %s27, 0
      %p185 = por %p183, %p184
      %s187 = sadd.s32 %s186, 1
      %p190 = scmp.eq.s32.totalorder %s21, 3
      %p191 = scmp.ne.s32.totalorder %s186, %s188
      %p192 = scmp.eq.s32.totalorder %s21, 0
      %p193 = por %p191, %p192
      %p194 = scmp.ne.s32.totalorder %s186, %s188
      %p195 = scmp.eq.s32.totalorder %s26, 3
      %p196 = por %p194, %p195
      %p197 = scmp.ne.s32.totalorder %s188, %s189
      %p198 = scmp.eq.s32.totalorder %s26, 0
      %p199 = por %p197, %p198
      %p200 = scmp.ne.s32.totalorder %s188, %s189
      %p201 = scmp.eq.s32.totalorder %s27, 3
      %p202 = por %p200, %p201
      %p204 = scmp.ne.s32.totalorder %s189, %s203
      %p205 = scmp.eq.s32.totalorder %s27, 0
      %p206 = por %p204, %p205
      %s207 = ssub.s32 %s28, %s40
      %s208 = ssub.s32 %s29, %s36
      %s209 = sor.u32 %s207, %s208
      %p210 = scmp.eq.s32.totalorder %s209, 0
      %s212 = sadd.s32 %s211, 1
      %s213 = scalar_select %p210, %s211, %s212
      %p216 = pneg %p210
      %p217 = scmp.eq.s32.totalorder %s21, 3
      %p218 = por %p216, %p217
      %p219 = scmp.ne.s32.totalorder %s211, %s214
      %p220 = scmp.eq.s32.totalorder %s21, 0
      %p221 = por %p219, %p220
      %p222 = scmp.ne.s32.totalorder %s211, %s214
      %p223 = scmp.eq.s32.totalorder %s26, 3
      %p224 = por %p222, %p223
      %p225 = scmp.ne.s32.totalorder %s214, %s215
      %p226 = scmp.eq.s32.totalorder %s26, 0
      %p227 = por %p225, %p226
      %p228 = scmp.ne.s32.totalorder %s214, %s215
      %p229 = scmp.eq.s32.totalorder %s27, 3
      %p230 = por %p228, %p229
      %p232 = scmp.ne.s32.totalorder %s215, %s231
      %p233 = scmp.eq.s32.totalorder %s27, 0
      %p234 = por %p232, %p233
      %s235 = ssub.s32 %s28, %s40
      %p236 = scmp.eq.s32.totalorder %s235, 0
      %s238 = sadd.s32 %s237, 1
      %s239 = scalar_select %p236, %s237, %s238
      %p242 = pneg %p236
      %p243 = scmp.eq.s32.totalorder %s21, 3
      %p244 = por %p242, %p243
      %p245 = scmp.ne.s32.totalorder %s237, %s240
      %p246 = scmp.eq.s32.totalorder %s21, 0
      %p247 = por %p245, %p246
      %p248 = scmp.ne.s32.totalorder %s237, %s240
      %p249 = scmp.eq.s32.totalorder %s26, 3
      %p250 = por %p248, %p249
      %p251 = scmp.ne.s32.totalorder %s240, %s241
      %p252 = scmp.eq.s32.totalorder %s26, 0
      %p253 = por %p251, %p252
      %p254 = scmp.ne.s32.totalorder %s240, %s241
      %p255 = scmp.eq.s32.totalorder %s27, 3
      %p256 = por %p254, %p255
      %p258 = scmp.ne.s32.totalorder %s241, %s257
      %p259 = scmp.eq.s32.totalorder %s27, 0
      %p260 = por %p258, %p259
      %p261 = scmp.le.s32.totalorder 1, %s21
      %p262 = scmp.lt.s32.totalorder %s21, 5
      %p263 = pnand %p261, %p262
      %p264 = pneg %p263
      // Predicated region
      $region9: #{tpu_custom_call.1} parent=5 // pred_check
        _
      $region10: #{tpu_custom_call.1} parent=5 // pred_check_branch
        %266 = sbr.rel (%p263) target = $region12
      $region11: #{tpu_custom_call.1} parent=5 // pred_region
        %s267 = ssub.s32 %s21, 1
        // Predicated region
        $region13: #{tpu_custom_call.1} parent=11 // pred_check
          %p268 = pneg %p136
        $region14: #{tpu_custom_call.1} parent=11 // pred_check_branch
          %270 = sbr.rel (%p268) target = $region16
        $region15: #{tpu_custom_call.1} parent=11 // pred_region
          _
        $region16: #{tpu_custom_call.1} parent=11 // pred_fallthru
          _
        // Predicated region
        $region17: #{tpu_custom_call.1} parent=11 // pred_check
          %p271 = pneg %p157
        $region18: #{tpu_custom_call.1} parent=11 // pred_check_branch
          %273 = sbr.rel (%p271) target = $region20
        $region19: #{tpu_custom_call.1} parent=11 // pred_region
          _
        $region20: #{tpu_custom_call.1} parent=11 // pred_fallthru
          _
        // Predicated region
        $region21: #{tpu_custom_call.1} parent=11 // pred_check
          %p274 = pneg %p178
        $region22: #{tpu_custom_call.1} parent=11 // pred_check_branch
          %276 = sbr.rel (%p274) target = $region24
        $region23: #{tpu_custom_call.1} parent=11 // pred_region
          _
        $region24: #{tpu_custom_call.1} parent=11 // pred_fallthru
          _
        // Predicated region
        $region25: #{tpu_custom_call.1} parent=11 // pred_check
          %p277 = pneg %p199
        $region26: #{tpu_custom_call.1} parent=11 // pred_check_branch
          %279 = sbr.rel (%p277) target = $region28
        $region27: #{tpu_custom_call.1} parent=11 // pred_region
          _
        $region28: #{tpu_custom_call.1} parent=11 // pred_fallthru
          _
      $region12: #{tpu_custom_call.1} parent=5 // pred_fallthru
        _
      %p280 = scmp.lt.s32.totalorder %s21, 4
      // Predicated region
      $region29: #{tpu_custom_call.1} parent=5 // pred_check
        %p281 = pneg %p280
      $region30: #{tpu_custom_call.1} parent=5 // pred_check_branch
        %283 = sbr.rel (%p281) target = $region32
      $region31: #{tpu_custom_call.1} parent=5 // pred_region
        // Predicated region
        $region33: #{tpu_custom_call.1} parent=31 // pred_check
          %p284 = pneg %p55
        $region34: #{tpu_custom_call.1} parent=31 // pred_check_branch
          %286 = sbr.rel (%p284) target = $region36
        $region35: #{tpu_custom_call.1} parent=31 // pred_region
          %s287 = sand.u32 %s45, 1
          %s288 = sand.u32 %s45, 1
          %s289 = smul.addr %s288, 64
          %s290 = scalar_lea.vmem [#allocation2], %s289
          %s291 = smul.u32 2, %s29
          %s292 = smul.addr %s28, 16
          %s293 = sadd.s32 %s291, %s292
          %s294 = smul.addr %s293, 8
          %s295 = scalar_lea.vmem %s0, %s294
          // Predicated region
          $region37: #{tpu_custom_call.1} parent=35 // pred_check
            _
          $region38: #{tpu_custom_call.1} parent=35 // pred_check_branch
            %297 = sbr.rel (0) target = $region40
          $region39: #{tpu_custom_call.1} parent=35 // pred_region
            // Predicated region
            $region41: #{tpu_custom_call.1} parent=39 // pred_check
              _
            $region42: #{tpu_custom_call.1} parent=39 // pred_check_branch
              %299 = sbr.rel (0) target = $region44
            $region43: #{tpu_custom_call.1} parent=39 // pred_region
              loop: start=0, step=1, limit=1
              $region45: #{tpu_custom_call.1} parent=43 // loop_pre_header
                _
              $region46: #{tpu_custom_call.1} parent=43 // loop_header
                %s301 = sphi 0, %s305
                %p302 = scmp.ge.s32.totalorder %s301, 1
                %s306 = sphi %s295, %s295
                %s307 = sphi %s290, %s290
              $region47: #{tpu_custom_call.1} parent=43 // loop_header_branch
                %304 = sbr.rel (%p302) target = $region51
              $region48: #{tpu_custom_call.1} parent=43 // loop_body
                %v308 = vld [vmem:[%s306] sm:$0xff]
                %309 = vst [vmem:[%s307] sm:$0xff] %v308
                %v310 = vld [vmem:[%s306 + $0x8] sm:$0xff]
                %311 = vst [vmem:[%s307 + $0x8] sm:$0xff] %v310
                %v312 = vld [vmem:[%s306 + $0x20] sm:$0xff]
                %313 = vst [vmem:[%s307 + $0x10] sm:$0xff] %v312
                %v314 = vld [vmem:[%s306 + $0x28] sm:$0xff]
                %315 = vst [vmem:[%s307 + $0x18] sm:$0xff] %v314
                %v316 = vld [vmem:[%s306 + $0x40] sm:$0xff]
                %317 = vst [vmem:[%s307 + $0x20] sm:$0xff] %v316
                %v318 = vld [vmem:[%s306 + $0x48] sm:$0xff]
                %319 = vst [vmem:[%s307 + $0x28] sm:$0xff] %v318
                %v320 = vld [vmem:[%s306 + $0x60] sm:$0xff]
                %321 = vst [vmem:[%s307 + $0x30] sm:$0xff] %v320
                %v322 = vld [vmem:[%s306 + $0x68] sm:$0xff]
                %323 = vst [vmem:[%s307 + $0x38] sm:$0xff] %v322
              $region49: #{tpu_custom_call.1} parent=43 // loop_footer
                %s305 = sadd.s32 1, %s301
              $region50: #{tpu_custom_call.1} parent=43 // loop_footer_branch
                %300 = sbr.rel target = $region46
              $region51: #{tpu_custom_call.1} parent=43 // loop_exit
                _
            $region44: #{tpu_custom_call.1} parent=39 // pred_fallthru
              _
            // Predicated region
            $region52: #{tpu_custom_call.1} parent=39 // pred_check
              _
            $region53: #{tpu_custom_call.1} parent=39 // pred_check_branch
              %325 = sbr.rel target = $region55
            $region54: #{tpu_custom_call.1} parent=39 // pred_region
              _
            $region55: #{tpu_custom_call.1} parent=39 // pred_fallthru
              _
          $region40: #{tpu_custom_call.1} parent=35 // pred_fallthru
            _
          %326 = vnop
        $region36: #{tpu_custom_call.1} parent=31 // pred_fallthru
          _
        // Predicated region
        $region56: #{tpu_custom_call.1} parent=31 // pred_check
          %p327 = pneg %p83
        $region57: #{tpu_custom_call.1} parent=31 // pred_check_branch
          %329 = sbr.rel (%p327) target = $region59
        $region58: #{tpu_custom_call.1} parent=31 // pred_region
          %s330 = smul.u32 2, %s29
          %p331 = scmp.lt.s32.totalorder %s28, 1
          %s332 = scalar_select %p331, %s28, 1
          %p333 = scmp.lt.s32.totalorder %s330, 3
          %s334 = scalar_select %p333, %s330, 3
          %s335 = smul.addr %s332, 4
          %s336 = sadd.s32 %s334, %s335
          %s337 = scalar_lea.vmem %s1, %s336
          %s338 = smul.u32 2, %s29
        $region59: #{tpu_custom_call.1} parent=31 // pred_fallthru
          _
        // Predicated region
        $region60: #{tpu_custom_call.1} parent=31 // pred_check
          %p339 = pneg %p109
        $region61: #{tpu_custom_call.1} parent=31 // pred_check_branch
          %341 = sbr.rel (%p339) target = $region63
        $region62: #{tpu_custom_call.1} parent=31 // pred_region
          %s342 = sand.u32 %s99, 1
          %s343 = scalar_lea.sflag [#allocation4], %s342
          %s344 = sand.u32 %s99, 1
          %s345 = smul.addr %s344, 1024
          %s346 = scalar_lea.vmem [#allocation3], %s345
          %s347 = smul.u32 2, %s29
          %s349 = ssub.s32 16384, 16384
          %350 = vsyncadd %s343, %s349
          %s351 = smul.addr %s347, 128
          %s352 = scalar_lea.hbm %s2, %s351
          %s353 = sshll.u32 %s346, 4
          %s354 = int_to_ptr.vmem [resolvable:$true] %s353
          %359 = dma.hbm_to_vmem [thread:$0]  %s352, 16384, %s354, %s343, 512, 256, 16
        $region63: #{tpu_custom_call.1} parent=31 // pred_fallthru
          _
      $region32: #{tpu_custom_call.1} parent=5 // pred_fallthru
        _
      %p360 = scmp.le.s32.totalorder 1, %s21
      %p361 = scmp.lt.s32.totalorder %s21, 5
      %p362 = pnand %p360, %p361
      %p363 = pneg %p362
      // Predicated region
      $region64: #{tpu_custom_call.1} parent=5 // pred_check
        _
      $region65: #{tpu_custom_call.1} parent=5 // pred_check_branch
        %365 = sbr.rel (%p362) target = $region67
      $region66: #{tpu_custom_call.1} parent=5 // pred_region
        %s366 = ssub.s32 %s21, 1
        %s367 = sand.u32 %s48, 1
        %s368 = sand.u32 %s48, 1
        %s369 = smul.addr %s368, 64
        %s370 = scalar_lea.vmem [#allocation2], %s369
        // Predicated region
        $region68: #{tpu_custom_call.1} parent=66 // pred_check
          %p371 = pneg %p61
        $region69: #{tpu_custom_call.1} parent=66 // pred_check_branch
          %373 = sbr.rel (%p371) target = $region71
        $region70: #{tpu_custom_call.1} parent=66 // pred_region
          _
        $region71: #{tpu_custom_call.1} parent=66 // pred_fallthru
          _
        %s374 = sand.u32 %s102, 1
        %s375 = scalar_lea.sflag [#allocation4], %s374
        %s376 = sand.u32 %s102, 1
        %s377 = smul.addr %s376, 1024
        %s378 = scalar_lea.vmem [#allocation3], %s377
        // Predicated region
        $region72: #{tpu_custom_call.1} parent=66 // pred_check
          %p379 = pneg %p115
        $region73: #{tpu_custom_call.1} parent=66 // pred_check_branch
          %381 = sbr.rel (%p379) target = $region75
        $region74: #{tpu_custom_call.1} parent=66 // pred_region
          %382 = dma.done %s375, 16384
        $region75: #{tpu_custom_call.1} parent=66 // pred_fallthru
          _
        %s383 = sand.u32 %s48, 1
        %s384 = sand.u32 %s48, 1
        %s385 = smul.addr %s384, 64
        %s386 = scalar_lea.vmem [#allocation2], %s385
        %p387 = pneg %p61
        %p388 = pneg %p58
        %s389 = smul.u32 2, %s31
        %p390 = scmp.lt.s32.totalorder %s30, 1
        %s391 = scalar_select %p390, %s30, 1
        %p392 = scmp.lt.s32.totalorder %s389, 3
        %s393 = scalar_select %p392, %s389, 3
        %s394 = smul.addr %s391, 4
        %s395 = sadd.s32 %s393, %s394
        %s396 = scalar_lea.vmem %s1, %s395
        %p397 = pneg %p89
        %p398 = pneg %p86
        %s399 = sand.u32 %s102, 1
        %s400 = scalar_lea.sflag [#allocation4], %s399
        %s401 = sand.u32 %s102, 1
        %s402 = smul.addr %s401, 1024
        %s403 = scalar_lea.vmem [#allocation3], %s402
        %p404 = pneg %p115
        %p405 = pneg %p112
        %p406 = pneg %p136
        %p407 = pneg %p133
        %p408 = pneg %p157
        %p409 = pneg %p154
        %p410 = pneg %p178
        %p411 = pneg %p175
        %p412 = pneg %p199
        %p413 = pneg %p196
        %p414 = pneg %p227
        %p415 = pneg %p224
        %s416 = sand.u32 %s214, 1
        %s417 = scalar_lea.sflag [#allocation5], %s416
        %s418 = sand.u32 %s214, 1
        %s419 = smul.addr %s418, 16
        %s420 = scalar_lea.vmem [#allocation6], %s419
        %p421 = pneg %p253
        %p422 = pneg %p250
        %p423 = scmp.lt.s32.totalorder %s30, 1
        %s424 = scalar_select %p423, %s30, 1
        %s425 = smul.addr %s424, 8
        %s426 = scalar_lea.vmem %s8, %s425
        %s427 = smul.u32 2, %s31
        %s428 = smul.u32 2, %s31
        %p429 = scmp.lt.s32.totalorder %s30, 1
        %s430 = scalar_select %p429, %s30, 1
        %p431 = scmp.lt.s32.totalorder %s428, 3
        %s432 = scalar_select %p431, %s428, 3
        %s433 = smul.addr %s430, 4
        %s434 = sadd.s32 %s432, %s433
        %s435 = scalar_lea.vmem %s1, %s434
        %s436 = smul.u32 2, %s31
        %s437 = smul.u32 2, %s31
        %s438 = smul.u32 2, %s31
        %p439 = scmp.lt.s32.totalorder %s30, 1
        %s440 = scalar_select %p439, %s30, 1
        %s441 = smul.addr %s440, 8
        %s442 = scalar_lea.vmem %s8, %s441
        %v443 = vld [vmem:[%s3] sm:$0xff]
        %v444 = vld [vmem:[%s3 + $0x8] sm:$0xff]
        %v445 = vld [vmem:[%s3 + $0x10] sm:$0xff]
        %v446 = vld [vmem:[%s3 + $0x18] sm:$0xff]
        %v447 = vld [vmem:[%s3 + $0x20] sm:$0xff]
        %v448 = vld [vmem:[%s3 + $0x28] sm:$0xff]
        %v449 = vld [vmem:[%s3 + $0x30] sm:$0xff]
        %v450 = vld [vmem:[%s3 + $0x38] sm:$0xff]
        %v451 = vld [vmem:[%s3 + $0x40] sm:$0xff]
        %v452 = vld [vmem:[%s3 + $0x48] sm:$0xff]
        %v453 = vld [vmem:[%s3 + $0x50] sm:$0xff]
        %v454 = vld [vmem:[%s3 + $0x58] sm:$0xff]
        %v455 = vld [vmem:[%s3 + $0x60] sm:$0xff]
        %v456 = vld [vmem:[%s3 + $0x68] sm:$0xff]
        %v457 = vld [vmem:[%s3 + $0x70] sm:$0xff]
        %v458 = vld [vmem:[%s3 + $0x78] sm:$0xff]
        %v459 = vld [vmem:[%s3 + $0x80] sm:$0xff]
        %v460 = vld [vmem:[%s3 + $0x88] sm:$0xff]
        %v461 = vld [vmem:[%s3 + $0x90] sm:$0xff]
        %v462 = vld [vmem:[%s3 + $0x98] sm:$0xff]
        %v463 = vld [vmem:[%s3 + $0xa0] sm:$0xff]
        %v464 = vld [vmem:[%s3 + $0xa8] sm:$0xff]
        %v465 = vld [vmem:[%s3 + $0xb0] sm:$0xff]
        %v466 = vld [vmem:[%s3 + $0xb8] sm:$0xff]
        %v467 = vld [vmem:[%s3 + $0xc0] sm:$0xff]
        %v468 = vld [vmem:[%s3 + $0xc8] sm:$0xff]
        %v469 = vld [vmem:[%s3 + $0xd0] sm:$0xff]
        %v470 = vld [vmem:[%s3 + $0xd8] sm:$0xff]
        %v471 = vld [vmem:[%s3 + $0xe0] sm:$0xff]
        %v472 = vld [vmem:[%s3 + $0xe8] sm:$0xff]
        %v473 = vld [vmem:[%s3 + $0xf0] sm:$0xff]
        %v474 = vld [vmem:[%s3 + $0xf8] sm:$0xff]
        %v475 = vld [vmem:[%s3 + $0x100] sm:$0xff]
        %v476 = vld [vmem:[%s3 + $0x108] sm:$0xff]
        %v477 = vld [vmem:[%s3 + $0x110] sm:$0xff]
        %v478 = vld [vmem:[%s3 + $0x118] sm:$0xff]
        %v479 = vld [vmem:[%s3 + $0x120] sm:$0xff]
        %v480 = vld [vmem:[%s3 + $0x128] sm:$0xff]
        %v481 = vld [vmem:[%s3 + $0x130] sm:$0xff]
        %v482 = vld [vmem:[%s3 + $0x138] sm:$0xff]
        %v483 = vld [vmem:[%s3 + $0x140] sm:$0xff]
        %v484 = vld [vmem:[%s3 + $0x148] sm:$0xff]
        %v485 = vld [vmem:[%s3 + $0x150] sm:$0xff]
        %v486 = vld [vmem:[%s3 + $0x158] sm:$0xff]
        %v487 = vld [vmem:[%s3 + $0x160] sm:$0xff]
        %v488 = vld [vmem:[%s3 + $0x168] sm:$0xff]
        %v489 = vld [vmem:[%s3 + $0x170] sm:$0xff]
        %v490 = vld [vmem:[%s3 + $0x178] sm:$0xff]
        %v491 = vld [vmem:[%s3 + $0x180] sm:$0xff]
        %v492 = vld [vmem:[%s3 + $0x188] sm:$0xff]
        %v493 = vld [vmem:[%s3 + $0x190] sm:$0xff]
        %v494 = vld [vmem:[%s3 + $0x198] sm:$0xff]
        %v495 = vld [vmem:[%s3 + $0x1a0] sm:$0xff]
        %v496 = vld [vmem:[%s3 + $0x1a8] sm:$0xff]
        %v497 = vld [vmem:[%s3 + $0x1b0] sm:$0xff]
        %v498 = vld [vmem:[%s3 + $0x1b8] sm:$0xff]
        %v499 = vld [vmem:[%s3 + $0x1c0] sm:$0xff]
        %v500 = vld [vmem:[%s3 + $0x1c8] sm:$0xff]
        %v501 = vld [vmem:[%s3 + $0x1d0] sm:$0xff]
        %v502 = vld [vmem:[%s3 + $0x1d8] sm:$0xff]
        %v503 = vld [vmem:[%s3 + $0x1e0] sm:$0xff]
        %v504 = vld [vmem:[%s3 + $0x1e8] sm:$0xff]
        %v505 = vld [vmem:[%s3 + $0x1f0] sm:$0xff]
        %v506 = vld [vmem:[%s3 + $0x1f8] sm:$0xff]
        %v507 = vld [vmem:[%s370] sm:$0xff]
        %v508 = vld [vmem:[%s370 + $0x8] sm:$0xff]
        %v509 = vld [vmem:[%s370 + $0x10] sm:$0xff]
        %v510 = vld [vmem:[%s370 + $0x18] sm:$0xff]
        %v511 = vld [vmem:[%s370 + $0x20] sm:$0xff]
        %v512 = vld [vmem:[%s370 + $0x28] sm:$0xff]
        %v513 = vld [vmem:[%s370 + $0x30] sm:$0xff]
        %v514 = vld [vmem:[%s370 + $0x38] sm:$0xff]
        %v515 = vld [vmem:[%s4] sm:$0xff]
        %v516 = vld [vmem:[%s4 + $0x8] sm:$0xff]
        %v517 = vld [vmem:[%s4 + $0x10] sm:$0xff]
        %v518 = vld [vmem:[%s4 + $0x18] sm:$0xff]
        %v519 = vld [vmem:[%s4 + $0x20] sm:$0xff]
        %v520 = vld [vmem:[%s4 + $0x28] sm:$0xff]
        %v521 = vld [vmem:[%s4 + $0x30] sm:$0xff]
        %v522 = vld [vmem:[%s4 + $0x38] sm:$0xff]
        %v523 = vld [vmem:[%s4 + $0x40] sm:$0xff]
        %v524 = vld [vmem:[%s4 + $0x48] sm:$0xff]
        %v525 = vld [vmem:[%s4 + $0x50] sm:$0xff]
        %v526 = vld [vmem:[%s4 + $0x58] sm:$0xff]
        %v527 = vld [vmem:[%s4 + $0x60] sm:$0xff]
        %v528 = vld [vmem:[%s4 + $0x68] sm:$0xff]
        %v529 = vld [vmem:[%s4 + $0x70] sm:$0xff]
        %v530 = vld [vmem:[%s4 + $0x78] sm:$0xff]
        %v531 = vld [vmem:[%s4 + $0x80] sm:$0xff]
        %v532 = vld [vmem:[%s4 + $0x88] sm:$0xff]
        %v533 = vld [vmem:[%s4 + $0x90] sm:$0xff]
        %v534 = vld [vmem:[%s4 + $0x98] sm:$0xff]
        %v535 = vld [vmem:[%s4 + $0xa0] sm:$0xff]
        %v536 = vld [vmem:[%s4 + $0xa8] sm:$0xff]
        %v537 = vld [vmem:[%s4 + $0xb0] sm:$0xff]
        %v538 = vld [vmem:[%s4 + $0xb8] sm:$0xff]
        %v539 = vld [vmem:[%s4 + $0xc0] sm:$0xff]
        %v540 = vld [vmem:[%s4 + $0xc8] sm:$0xff]
        %v541 = vld [vmem:[%s4 + $0xd0] sm:$0xff]
        %v542 = vld [vmem:[%s4 + $0xd8] sm:$0xff]
        %v543 = vld [vmem:[%s4 + $0xe0] sm:$0xff]
        %v544 = vld [vmem:[%s4 + $0xe8] sm:$0xff]
        %v545 = vld [vmem:[%s4 + $0xf0] sm:$0xff]
        %v546 = vld [vmem:[%s4 + $0xf8] sm:$0xff]
        %v547 = vld [vmem:[%s4 + $0x100] sm:$0xff]
        %v548 = vld [vmem:[%s4 + $0x108] sm:$0xff]
        %v549 = vld [vmem:[%s4 + $0x110] sm:$0xff]
        %v550 = vld [vmem:[%s4 + $0x118] sm:$0xff]
        %v551 = vld [vmem:[%s4 + $0x120] sm:$0xff]
        %v552 = vld [vmem:[%s4 + $0x128] sm:$0xff]
        %v553 = vld [vmem:[%s4 + $0x130] sm:$0xff]
        %v554 = vld [vmem:[%s4 + $0x138] sm:$0xff]
        %v555 = vld [vmem:[%s4 + $0x140] sm:$0xff]
        %v556 = vld [vmem:[%s4 + $0x148] sm:$0xff]
        %v557 = vld [vmem:[%s4 + $0x150] sm:$0xff]
        %v558 = vld [vmem:[%s4 + $0x158] sm:$0xff]
        %v559 = vld [vmem:[%s4 + $0x160] sm:$0xff]
        %v560 = vld [vmem:[%s4 + $0x168] sm:$0xff]
        %v561 = vld [vmem:[%s4 + $0x170] sm:$0xff]
        %v562 = vld [vmem:[%s4 + $0x178] sm:$0xff]
        %v563 = vld [vmem:[%s4 + $0x180] sm:$0xff]
        %v564 = vld [vmem:[%s4 + $0x188] sm:$0xff]
        %v565 = vld [vmem:[%s4 + $0x190] sm:$0xff]
        %v566 = vld [vmem:[%s4 + $0x198] sm:$0xff]
        %v567 = vld [vmem:[%s4 + $0x1a0] sm:$0xff]
        %v568 = vld [vmem:[%s4 + $0x1a8] sm:$0xff]
        %v569 = vld [vmem:[%s4 + $0x1b0] sm:$0xff]
        %v570 = vld [vmem:[%s4 + $0x1b8] sm:$0xff]
        %v571 = vld [vmem:[%s4 + $0x1c0] sm:$0xff]
        %v572 = vld [vmem:[%s4 + $0x1c8] sm:$0xff]
        %v573 = vld [vmem:[%s4 + $0x1d0] sm:$0xff]
        %v574 = vld [vmem:[%s4 + $0x1d8] sm:$0xff]
        %v575 = vld [vmem:[%s4 + $0x1e0] sm:$0xff]
        %v576 = vld [vmem:[%s4 + $0x1e8] sm:$0xff]
        %v577 = vld [vmem:[%s4 + $0x1f0] sm:$0xff]
        %v578 = vld [vmem:[%s4 + $0x1f8] sm:$0xff]
        %580 = vset.pattern.permute.xlu0 0
        %581 = vperm.xlu0 %580, %v515
        %v582 = vpop.permute.xlu0 %581
        %585 = vset.pattern.permute.xlu0 0
        %586 = vperm.xlu0 %585, %v516
        %v587 = vpop.permute.xlu0 %586
        %590 = vset.pattern.permute.xlu0 0
        %591 = vperm.xlu0 %590, %v517
        %v592 = vpop.permute.xlu0 %591
        %595 = vset.pattern.permute.xlu0 0
        %596 = vperm.xlu0 %595, %v518
        %v597 = vpop.permute.xlu0 %596
        %600 = vset.pattern.permute.xlu0 0
        %601 = vperm.xlu0 %600, %v519
        %v602 = vpop.permute.xlu0 %601
        %605 = vset.pattern.permute.xlu0 0
        %606 = vperm.xlu0 %605, %v520
        %v607 = vpop.permute.xlu0 %606
        %610 = vset.pattern.permute.xlu0 0
        %611 = vperm.xlu0 %610, %v521
        %v612 = vpop.permute.xlu0 %611
        %615 = vset.pattern.permute.xlu0 0
        %616 = vperm.xlu0 %615, %v522
        %v617 = vpop.permute.xlu0 %616
        %620 = vset.pattern.permute.xlu0 0
        %621 = vperm.xlu0 %620, %v523
        %v622 = vpop.permute.xlu0 %621
        %625 = vset.pattern.permute.xlu0 0
        %626 = vperm.xlu0 %625, %v524
        %v627 = vpop.permute.xlu0 %626
        %630 = vset.pattern.permute.xlu0 0
        %631 = vperm.xlu0 %630, %v525
        %v632 = vpop.permute.xlu0 %631
        %635 = vset.pattern.permute.xlu0 0
        %636 = vperm.xlu0 %635, %v526
        %v637 = vpop.permute.xlu0 %636
        %640 = vset.pattern.permute.xlu0 0
        %641 = vperm.xlu0 %640, %v527
        %v642 = vpop.permute.xlu0 %641
        %645 = vset.pattern.permute.xlu0 0
        %646 = vperm.xlu0 %645, %v528
        %v647 = vpop.permute.xlu0 %646
        %650 = vset.pattern.permute.xlu0 0
        %651 = vperm.xlu0 %650, %v529
        %v652 = vpop.permute.xlu0 %651
        %655 = vset.pattern.permute.xlu0 0
        %656 = vperm.xlu0 %655, %v530
        %v657 = vpop.permute.xlu0 %656
        %660 = vset.pattern.permute.xlu0 0
        %661 = vperm.xlu0 %660, %v531
        %v662 = vpop.permute.xlu0 %661
        %665 = vset.pattern.permute.xlu0 0
        %666 = vperm.xlu0 %665, %v532
        %v667 = vpop.permute.xlu0 %666
        %670 = vset.pattern.permute.xlu0 0
        %671 = vperm.xlu0 %670, %v533
        %v672 = vpop.permute.xlu0 %671
        %675 = vset.pattern.permute.xlu0 0
        %676 = vperm.xlu0 %675, %v534
        %v677 = vpop.permute.xlu0 %676
        %680 = vset.pattern.permute.xlu0 0
        %681 = vperm.xlu0 %680, %v535
        %v682 = vpop.permute.xlu0 %681
        %685 = vset.pattern.permute.xlu0 0
        %686 = vperm.xlu0 %685, %v536
        %v687 = vpop.permute.xlu0 %686
        %690 = vset.pattern.permute.xlu0 0
        %691 = vperm.xlu0 %690, %v537
        %v692 = vpop.permute.xlu0 %691
        %695 = vset.pattern.permute.xlu0 0
        %696 = vperm.xlu0 %695, %v538
        %v697 = vpop.permute.xlu0 %696
        %700 = vset.pattern.permute.xlu0 0
        %701 = vperm.xlu0 %700, %v539
        %v702 = vpop.permute.xlu0 %701
        %705 = vset.pattern.permute.xlu0 0
        %706 = vperm.xlu0 %705, %v540
        %v707 = vpop.permute.xlu0 %706
        %710 = vset.pattern.permute.xlu0 0
        %711 = vperm.xlu0 %710, %v541
        %v712 = vpop.permute.xlu0 %711
        %715 = vset.pattern.permute.xlu0 0
        %716 = vperm.xlu0 %715, %v542
        %v717 = vpop.permute.xlu0 %716
        %720 = vset.pattern.permute.xlu0 0
        %721 = vperm.xlu0 %720, %v543
        %v722 = vpop.permute.xlu0 %721
        %725 = vset.pattern.permute.xlu0 0
        %726 = vperm.xlu0 %725, %v544
        %v727 = vpop.permute.xlu0 %726
        %730 = vset.pattern.permute.xlu0 0
        %731 = vperm.xlu0 %730, %v545
        %v732 = vpop.permute.xlu0 %731
        %735 = vset.pattern.permute.xlu0 0
        %736 = vperm.xlu0 %735, %v546
        %v737 = vpop.permute.xlu0 %736
        %740 = vset.pattern.permute.xlu0 0
        %741 = vperm.xlu0 %740, %v547
        %v742 = vpop.permute.xlu0 %741
        %745 = vset.pattern.permute.xlu0 0
        %746 = vperm.xlu0 %745, %v548
        %v747 = vpop.permute.xlu0 %746
        %750 = vset.pattern.permute.xlu0 0
        %751 = vperm.xlu0 %750, %v549
        %v752 = vpop.permute.xlu0 %751
        %755 = vset.pattern.permute.xlu0 0
        %756 = vperm.xlu0 %755, %v550
        %v757 = vpop.permute.xlu0 %756
        %760 = vset.pattern.permute.xlu0 0
        %761 = vperm.xlu0 %760, %v551
        %v762 = vpop.permute.xlu0 %761
        %765 = vset.pattern.permute.xlu0 0
        %766 = vperm.xlu0 %765, %v552
        %v767 = vpop.permute.xlu0 %766
        %770 = vset.pattern.permute.xlu0 0
        %771 = vperm.xlu0 %770, %v553
        %v772 = vpop.permute.xlu0 %771
        %775 = vset.pattern.permute.xlu0 0
        %776 = vperm.xlu0 %775, %v554
        %v777 = vpop.permute.xlu0 %776
        %780 = vset.pattern.permute.xlu0 0
        %781 = vperm.xlu0 %780, %v555
        %v782 = vpop.permute.xlu0 %781
        %785 = vset.pattern.permute.xlu0 0
        %786 = vperm.xlu0 %785, %v556
        %v787 = vpop.permute.xlu0 %786
        %790 = vset.pattern.permute.xlu0 0
        %791 = vperm.xlu0 %790, %v557
        %v792 = vpop.permute.xlu0 %791
        %795 = vset.pattern.permute.xlu0 0
        %796 = vperm.xlu0 %795, %v558
        %v797 = vpop.permute.xlu0 %796
        %800 = vset.pattern.permute.xlu0 0
        %801 = vperm.xlu0 %800, %v559
        %v802 = vpop.permute.xlu0 %801
        %805 = vset.pattern.permute.xlu0 0
        %806 = vperm.xlu0 %805, %v560
        %v807 = vpop.permute.xlu0 %806
        %810 = vset.pattern.permute.xlu0 0
        %811 = vperm.xlu0 %810, %v561
        %v812 = vpop.permute.xlu0 %811
        %815 = vset.pattern.permute.xlu0 0
        %816 = vperm.xlu0 %815, %v562
        %v817 = vpop.permute.xlu0 %816
        %820 = vset.pattern.permute.xlu0 0
        %821 = vperm.xlu0 %820, %v563
        %v822 = vpop.permute.xlu0 %821
        %825 = vset.pattern.permute.xlu0 0
        %826 = vperm.xlu0 %825, %v564
        %v827 = vpop.permute.xlu0 %826
        %830 = vset.pattern.permute.xlu0 0
        %831 = vperm.xlu0 %830, %v565
        %v832 = vpop.permute.xlu0 %831
        %835 = vset.pattern.permute.xlu0 0
        %836 = vperm.xlu0 %835, %v566
        %v837 = vpop.permute.xlu0 %836
        %840 = vset.pattern.permute.xlu0 0
        %841 = vperm.xlu0 %840, %v567
        %v842 = vpop.permute.xlu0 %841
        %845 = vset.pattern.permute.xlu0 0
        %846 = vperm.xlu0 %845, %v568
        %v847 = vpop.permute.xlu0 %846
        %850 = vset.pattern.permute.xlu0 0
        %851 = vperm.xlu0 %850, %v569
        %v852 = vpop.permute.xlu0 %851
        %855 = vset.pattern.permute.xlu0 0
        %856 = vperm.xlu0 %855, %v570
        %v857 = vpop.permute.xlu0 %856
        %860 = vset.pattern.permute.xlu0 0
        %861 = vperm.xlu0 %860, %v571
        %v862 = vpop.permute.xlu0 %861
        %865 = vset.pattern.permute.xlu0 0
        %866 = vperm.xlu0 %865, %v572
        %v867 = vpop.permute.xlu0 %866
        %870 = vset.pattern.permute.xlu0 0
        %871 = vperm.xlu0 %870, %v573
        %v872 = vpop.permute.xlu0 %871
        %875 = vset.pattern.permute.xlu0 0
        %876 = vperm.xlu0 %875, %v574
        %v877 = vpop.permute.xlu0 %876
        %880 = vset.pattern.permute.xlu0 0
        %881 = vperm.xlu0 %880, %v575
        %v882 = vpop.permute.xlu0 %881
        %885 = vset.pattern.permute.xlu0 0
        %886 = vperm.xlu0 %885, %v576
        %v887 = vpop.permute.xlu0 %886
        %890 = vset.pattern.permute.xlu0 0
        %891 = vperm.xlu0 %890, %v577
        %v892 = vpop.permute.xlu0 %891
        %895 = vset.pattern.permute.xlu0 0
        %896 = vperm.xlu0 %895, %v578
        %v897 = vpop.permute.xlu0 %896
        %vm899 = vcmask 261120
        %v901 = vsel %vm899, %v443, 0
        %v904 = vsel %vm899, %v444, 0
        %v907 = vsel %vm899, %v445, 0
        %v910 = vsel %vm899, %v446, 0
        %v913 = vsel %vm899, %v447, 0
        %v916 = vsel %vm899, %v448, 0
        %v919 = vsel %vm899, %v449, 0
        %v922 = vsel %vm899, %v450, 0
        %v925 = vsel %vm899, %v451, 0
        %v928 = vsel %vm899, %v452, 0
        %v931 = vsel %vm899, %v453, 0
        %v934 = vsel %vm899, %v454, 0
        %v937 = vsel %vm899, %v455, 0
        %v940 = vsel %vm899, %v456, 0
        %v943 = vsel %vm899, %v457, 0
        %v946 = vsel %vm899, %v458, 0
        %v949 = vsel %vm899, %v459, 0
        %v952 = vsel %vm899, %v460, 0
        %v955 = vsel %vm899, %v461, 0
        %v958 = vsel %vm899, %v462, 0
        %v961 = vsel %vm899, %v463, 0
        %v964 = vsel %vm899, %v464, 0
        %v967 = vsel %vm899, %v465, 0
        %v970 = vsel %vm899, %v466, 0
        %v973 = vsel %vm899, %v467, 0
        %v976 = vsel %vm899, %v468, 0
        %v979 = vsel %vm899, %v469, 0
        %v982 = vsel %vm899, %v470, 0
        %v985 = vsel %vm899, %v471, 0
        %v988 = vsel %vm899, %v472, 0
        %v991 = vsel %vm899, %v473, 0
        %v994 = vsel %vm899, %v474, 0
        %v997 = vsel %vm899, %v475, 0
        %v1000 = vsel %vm899, %v476, 0
        %v1003 = vsel %vm899, %v477, 0
        %v1006 = vsel %vm899, %v478, 0
        %v1009 = vsel %vm899, %v479, 0
        %v1012 = vsel %vm899, %v480, 0
        %v1015 = vsel %vm899, %v481, 0
        %v1018 = vsel %vm899, %v482, 0
        %v1021 = vsel %vm899, %v483, 0
        %v1024 = vsel %vm899, %v484, 0
        %v1027 = vsel %vm899, %v485, 0
        %v1030 = vsel %vm899, %v486, 0
        %v1033 = vsel %vm899, %v487, 0
        %v1036 = vsel %vm899, %v488, 0
        %v1039 = vsel %vm899, %v489, 0
        %v1042 = vsel %vm899, %v490, 0
        %v1045 = vsel %vm899, %v491, 0
        %v1048 = vsel %vm899, %v492, 0
        %v1051 = vsel %vm899, %v493, 0
        %v1054 = vsel %vm899, %v494, 0
        %v1057 = vsel %vm899, %v495, 0
        %v1060 = vsel %vm899, %v496, 0
        %v1063 = vsel %vm899, %v497, 0
        %v1066 = vsel %vm899, %v498, 0
        %v1069 = vsel %vm899, %v499, 0
        %v1072 = vsel %vm899, %v500, 0
        %v1075 = vsel %vm899, %v501, 0
        %v1078 = vsel %vm899, %v502, 0
        %v1081 = vsel %vm899, %v503, 0
        %v1084 = vsel %vm899, %v504, 0
        %v1087 = vsel %vm899, %v505, 0
        %v1090 = vsel %vm899, %v506, 0
        %1092 = vmatprep.subr.mxu0 %v508
        %1093 = vmatpush1.msra.mxu0 %v507
        %1094 = vmatprep.subr.mxu0 %v510
        %1095 = vmatpush1.msra.mxu0 %v509
        %1096 = vmatprep.subr.mxu0 %v512
        %1097 = vmatpush1.msra.mxu0 %v511
        %1098 = vmatprep.subr.mxu0 %v514
        %1099 = vmatpush1.msra.mxu0 %v513
        %1100 = vmatprep.subr.mxu0 0.0
        %1101 = vmatpush1.msra.mxu0 0.0
        %1102 = vmatprep.subr.mxu0 0.0
        %1103 = vmatpush1.msra.mxu0 0.0
        %1104 = vmatprep.subr.mxu0 0.0
        %1105 = vmatpush1.msra.mxu0 0.0
        %1106 = vmatprep.subr.mxu0 0.0
        %1107 = vmatpush1.msra.mxu0 0.0
        %1108 = vmatprep.subr.mxu0 0.0
        %1109 = vmatpush1.msra.mxu0 0.0
        %1110 = vmatprep.subr.mxu0 0.0
        %1111 = vmatpush1.msra.mxu0 0.0
        %1112 = vmatprep.subr.mxu0 0.0
        %1113 = vmatpush1.msra.mxu0 0.0
        %1114 = vmatprep.subr.mxu0 0.0
        %1115 = vmatpush1.msra.mxu0 0.0
        %1116 = vmatprep.subr.mxu0 0.0
        %1117 = vmatpush1.msra.mxu0 0.0
        %1118 = vmatprep.subr.mxu0 0.0
        %1119 = vmatpush1.msra.mxu0 0.0
        %1120 = vmatprep.subr.mxu0 0.0
        %1121 = vmatpush1.msra.mxu0 0.0
        %1122 = vmatprep.subr.mxu0 0.0
        %1123 = vmatpush1.msra.mxu0 0.0
        %1124 = vmatprep.subr.mxu0 0.0
        %1125 = vmatpush1.msra.mxu0 0.0
        %1126 = vmatprep.subr.mxu0 0.0
        %1127 = vmatpush1.msra.mxu0 0.0
        %1128 = vmatprep.subr.mxu0 0.0
        %1129 = vmatpush1.msra.mxu0 0.0
        %1130 = vmatprep.subr.mxu0 0.0
        %1131 = vmatpush1.msra.mxu0 0.0
        %1132 = vmatprep.subr.mxu0 0.0
        %1133 = vmatpush1.msra.mxu0 0.0
        %1134 = vmatprep.subr.mxu0 0.0
        %1135 = vmatpush1.msra.mxu0 0.0
        %1136 = vmatprep.subr.mxu0 0.0
        %1137 = vmatpush1.msra.mxu0 0.0
        %1138 = vmatprep.subr.mxu0 0.0
        %1139 = vmatpush1.msra.mxu0 0.0
        %1140 = vmatprep.subr.mxu0 0.0
        %1141 = vmatpush1.msra.mxu0 0.0
        %1142 = vmatprep.subr.mxu0 0.0
        %1143 = vmatpush1.msra.mxu0 0.0
        %1144 = vmatprep.subr.mxu0 0.0
        %1145 = vmatpush1.msra.mxu0 0.0
        %1146 = vmatprep.subr.mxu0 0.0
        %1147 = vmatpush1.msra.mxu0 0.0
        %1148 = vmatprep.subr.mxu0 0.0
        %1149 = vmatpush1.msra.mxu0 0.0
        %1150 = vmatprep.subr.mxu0 0.0
        %1151 = vmatpush1.msra.mxu0 0.0
        %1152 = vmatprep.subr.mxu0 0.0
        %1153 = vmatpush1.msra.mxu0 0.0
        %1154 = vmatprep.subr.mxu0 0.0
        %1155 = vmatpush1.msra.mxu0 0.0
        %1156 = vmatprep.mubr.f32.mxu0 0.0
        %1157 = vmatmul.mubr.f32.gmra.mrb[0].mxu0 %v901
        %v1158 = vpop.f32.mrb[0].mxu0
        %v1159 = vadd.f32 %v582, %v1158
        %v1160 = vpop.f32.mrb[0].mxu0
        %v1161 = vadd.f32 %v582, %v1160
        %1162 = vmatprep.mubr.f32.mxu0 0.0
        %1163 = vmatmul.mubr.f32.gmra.mrb[0].mxu0 %v904
        %v1164 = vpop.f32.mrb[0].mxu0
        %v1165 = vadd.f32 %v587, %v1164
        %v1166 = vpop.f32.mrb[0].mxu0
        %v1167 = vadd.f32 %v587, %v1166
        %1168 = vmatprep.mubr.f32.mxu0 0.0
        %1169 = vmatmul.mubr.f32.gmra.mrb[0].mxu0 %v907
        %v1170 = vpop.f32.mrb[0].mxu0
        %v1171 = vadd.f32 %v592, %v1170
        %v1172 = vpop.f32.mrb[0].mxu0
        %v1173 = vadd.f32 %v592, %v1172
        %1174 = vmatprep.mubr.f32.mxu0 0.0
        %1175 = vmatmul.mubr.f32.gmra.mrb[0].mxu0 %v910
        %v1176 = vpop.f32.mrb[0].mxu0
        %v1177 = vadd.f32 %v597, %v1176
        %v1178 = vpop.f32.mrb[0].mxu0
        %v1179 = vadd.f32 %v597, %v1178
        %1180 = vmatprep.mubr.f32.mxu0 0.0
        %1181 = vmatmul.mubr.f32.gmra.mrb[0].mxu0 %v913
        %v1182 = vpop.f32.mrb[0].mxu0
        %v1183 = vadd.f32 %v602, %v1182
        %v1184 = vpop.f32.mrb[0].mxu0
        %v1185 = vadd.f32 %v602, %v1184
        %1186 = vmatprep.mubr.f32.mxu0 0.0
        %1187 = vmatmul.mubr.f32.gmra.mrb[0].mxu0 %v916
        %v1188 = vpop.f32.mrb[0].mxu0
        %v1189 = vadd.f32 %v607, %v1188
        %v1190 = vpop.f32.mrb[0].mxu0
        %v1191 = vadd.f32 %v607, %v1190
        %1192 = vmatprep.mubr.f32.mxu0 0.0
        %1193 = vmatmul.mubr.f32.gmra.mrb[0].mxu0 %v919
        %v1194 = vpop.f32.mrb[0].mxu0
        %v1195 = vadd.f32 %v612, %v1194
        %v1196 = vpop.f32.mrb[0].mxu0
        %v1197 = vadd.f32 %v612, %v1196
        %1198 = vmatprep.mubr.f32.mxu0 0.0
        %1199 = vmatmul.mubr.f32.gmra.mrb[0].mxu0 %v922
        %v1200 = vpop.f32.mrb[0].mxu0
        %v1201 = vadd.f32 %v617, %v1200
        %v1202 = vpop.f32.mrb[0].mxu0
        %v1203 = vadd.f32 %v617, %v1202
        %1204 = vmatprep.mubr.f32.mxu0 0.0
        %1205 = vmatmul.mubr.f32.gmra.mrb[0].mxu0 %v925
        %v1206 = vpop.f32.mrb[0].mxu0
        %v1207 = vadd.f32 %v622, %v1206
        %v1208 = vpop.f32.mrb[0].mxu0
        %v1209 = vadd.f32 %v622, %v1208
        %1210 = vmatprep.mubr.f32.mxu0 0.0
        %1211 = vmatmul.mubr.f32.gmra.mrb[0].mxu0 %v928
        %v1212 = vpop.f32.mrb[0].mxu0
        %v1213 = vadd.f32 %v627, %v1212
        %v1214 = vpop.f32.mrb[0].mxu0
        %v1215 = vadd.f32 %v627, %v1214
        %1216 = vmatprep.mubr.f32.mxu0 0.0
        %1217 = vmatmul.mubr.f32.gmra.mrb[0].mxu0 %v931
        %v1218 = vpop.f32.mrb[0].mxu0
        %v1219 = vadd.f32 %v632, %v1218
        %v1220 = vpop.f32.mrb[0].mxu0
        %v1221 = vadd.f32 %v632, %v1220
        %1222 = vmatprep.mubr.f32.mxu0 0.0
        %1223 = vmatmul.mubr.f32.gmra.mrb[0].mxu0 %v934
        %v1224 = vpop.f32.mrb[0].mxu0
        %v1225 = vadd.f32 %v637, %v1224
        %v1226 = vpop.f32.mrb[0].mxu0
        %v1227 = vadd.f32 %v637, %v1226
        %1228 = vmatprep.mubr.f32.mxu0 0.0
        %1229 = vmatmul.mubr.f32.gmra.mrb[0].mxu0 %v937
        %v1230 = vpop.f32.mrb[0].mxu0
        %v1231 = vadd.f32 %v642, %v1230
        %v1232 = vpop.f32.mrb[0].mxu0
        %v1233 = vadd.f32 %v642, %v1232
        %1234 = vmatprep.mubr.f32.mxu0 0.0
        %1235 = vmatmul.mubr.f32.gmra.mrb[0].mxu0 %v940
        %v1236 = vpop.f32.mrb[0].mxu0
        %v1237 = vadd.f32 %v647, %v1236
        %v1238 = vpop.f32.mrb[0].mxu0
        %v1239 = vadd.f32 %v647, %v1238
        %1240 = vmatprep.mubr.f32.mxu0 0.0
        %1241 = vmatmul.mubr.f32.gmra.mrb[0].mxu0 %v943
        %v1242 = vpop.f32.mrb[0].mxu0
        %v1243 = vadd.f32 %v652, %v1242
        %v1244 = vpop.f32.mrb[0].mxu0
        %v1245 = vadd.f32 %v652, %v1244
        %1246 = vmatprep.mubr.f32.mxu0 0.0
        %1247 = vmatmul.mubr.f32.gmra.mrb[0].mxu0 %v946
        %v1248 = vpop.f32.mrb[0].mxu0
        %v1249 = vadd.f32 %v657, %v1248
        %v1250 = vpop.f32.mrb[0].mxu0
        %v1251 = vadd.f32 %v657, %v1250
        %1252 = vmatprep.mubr.f32.mxu0 0.0
        %1253 = vmatmul.mubr.f32.gmra.mrb[0].mxu0 %v949
        %v1254 = vpop.f32.mrb[0].mxu0
        %v1255 = vadd.f32 %v662, %v1254
        %v1256 = vpop.f32.mrb[0].mxu0
        %v1257 = vadd.f32 %v662, %v1256
        %1258 = vmatprep.mubr.f32.mxu0 0.0
        %1259 = vmatmul.mubr.f32.gmra.mrb[0].mxu0 %v952
        %v1260 = vpop.f32.mrb[0].mxu0
        %v1261 = vadd.f32 %v667, %v1260
        %v1262 = vpop.f32.mrb[0].mxu0
        %v1263 = vadd.f32 %v667, %v1262
        %1264 = vmatprep.mubr.f32.mxu0 0.0
        %1265 = vmatmul.mubr.f32.gmra.mrb[0].mxu0 %v955
        %v1266 = vpop.f32.mrb[0].mxu0
        %v1267 = vadd.f32 %v672, %v1266
        %v1268 = vpop.f32.mrb[0].mxu0
        %v1269 = vadd.f32 %v672, %v1268
        %1270 = vmatprep.mubr.f32.mxu0 0.0
        %1271 = vmatmul.mubr.f32.gmra.mrb[0].mxu0 %v958
        %v1272 = vpop.f32.mrb[0].mxu0
        %v1273 = vadd.f32 %v677, %v1272
        %v1274 = vpop.f32.mrb[0].mxu0
        %v1275 = vadd.f32 %v677, %v1274
        %1276 = vmatprep.mubr.f32.mxu0 0.0
        %1277 = vmatmul.mubr.f32.gmra.mrb[0].mxu0 %v961
        %v1278 = vpop.f32.mrb[0].mxu0
        %v1279 = vadd.f32 %v682, %v1278
        %v1280 = vpop.f32.mrb[0].mxu0
        %v1281 = vadd.f32 %v682, %v1280
        %1282 = vmatprep.mubr.f32.mxu0 0.0
        %1283 = vmatmul.mubr.f32.gmra.mrb[0].mxu0 %v964
        %v1284 = vpop.f32.mrb[0].mxu0
        %v1285 = vadd.f32 %v687, %v1284
        %v1286 = vpop.f32.mrb[0].mxu0
        %v1287 = vadd.f32 %v687, %v1286
        %1288 = vmatprep.mubr.f32.mxu0 0.0
        %1289 = vmatmul.mubr.f32.gmra.mrb[0].mxu0 %v967
        %v1290 = vpop.f32.mrb[0].mxu0
        %v1291 = vadd.f32 %v692, %v1290
        %v1292 = vpop.f32.mrb[0].mxu0
        %v1293 = vadd.f32 %v692, %v1292
        %1294 = vmatprep.mubr.f32.mxu0 0.0
        %1295 = vmatmul.mubr.f32.gmra.mrb[0].mxu0 %v970
        %v1296 = vpop.f32.mrb[0].mxu0
        %v1297 = vadd.f32 %v697, %v1296
        %v1298 = vpop.f32.mrb[0].mxu0
        %v1299 = vadd.f32 %v697, %v1298
        %1300 = vmatprep.mubr.f32.mxu0 0.0
        %1301 = vmatmul.mubr.f32.gmra.mrb[0].mxu0 %v973
        %v1302 = vpop.f32.mrb[0].mxu0
        %v1303 = vadd.f32 %v702, %v1302
        %v1304 = vpop.f32.mrb[0].mxu0
        %v1305 = vadd.f32 %v702, %v1304
        %1306 = vmatprep.mubr.f32.mxu0 0.0
        %1307 = vmatmul.mubr.f32.gmra.mrb[0].mxu0 %v976
        %v1308 = vpop.f32.mrb[0].mxu0
        %v1309 = vadd.f32 %v707, %v1308
        %v1310 = vpop.f32.mrb[0].mxu0
        %v1311 = vadd.f32 %v707, %v1310
        %1312 = vmatprep.mubr.f32.mxu0 0.0
        %1313 = vmatmul.mubr.f32.gmra.mrb[0].mxu0 %v979
        %v1314 = vpop.f32.mrb[0].mxu0
        %v1315 = vadd.f32 %v712, %v1314
        %v1316 = vpop.f32.mrb[0].mxu0
        %v1317 = vadd.f32 %v712, %v1316
        %1318 = vmatprep.mubr.f32.mxu0 0.0
        %1319 = vmatmul.mubr.f32.gmra.mrb[0].mxu0 %v982
        %v1320 = vpop.f32.mrb[0].mxu0
        %v1321 = vadd.f32 %v717, %v1320
        %v1322 = vpop.f32.mrb[0].mxu0
        %v1323 = vadd.f32 %v717, %v1322
        %1324 = vmatprep.mubr.f32.mxu0 0.0
        %1325 = vmatmul.mubr.f32.gmra.mrb[0].mxu0 %v985
        %v1326 = vpop.f32.mrb[0].mxu0
        %v1327 = vadd.f32 %v722, %v1326
        %v1328 = vpop.f32.mrb[0].mxu0
        %v1329 = vadd.f32 %v722, %v1328
        %1330 = vmatprep.mubr.f32.mxu0 0.0
        %1331 = vmatmul.mubr.f32.gmra.mrb[0].mxu0 %v988
        %v1332 = vpop.f32.mrb[0].mxu0
        %v1333 = vadd.f32 %v727, %v1332
        %v1334 = vpop.f32.mrb[0].mxu0
        %v1335 = vadd.f32 %v727, %v1334
        %1336 = vmatprep.mubr.f32.mxu0 0.0
        %1337 = vmatmul.mubr.f32.gmra.mrb[0].mxu0 %v991
        %v1338 = vpop.f32.mrb[0].mxu0
        %v1339 = vadd.f32 %v732, %v1338
        %v1340 = vpop.f32.mrb[0].mxu0
        %v1341 = vadd.f32 %v732, %v1340
        %1342 = vmatprep.mubr.f32.mxu0 0.0
        %1343 = vmatmul.mubr.f32.gmra.mrb[0].mxu0 %v994
        %v1344 = vpop.f32.mrb[0].mxu0
        %v1345 = vadd.f32 %v737, %v1344
        %v1346 = vpop.f32.mrb[0].mxu0
        %v1347 = vadd.f32 %v737, %v1346
        %1348 = vmatprep.mubr.f32.mxu0 0.0
        %1349 = vmatmul.mubr.f32.gmra.mrb[0].mxu0 %v997
        %v1350 = vpop.f32.mrb[0].mxu0
        %v1351 = vadd.f32 %v742, %v1350
        %v1352 = vpop.f32.mrb[0].mxu0
        %v1353 = vadd.f32 %v742, %v1352
        %1354 = vmatprep.mubr.f32.mxu0 0.0
        %1355 = vmatmul.mubr.f32.gmra.mrb[0].mxu0 %v1000
        %v1356 = vpop.f32.mrb[0].mxu0
        %v1357 = vadd.f32 %v747, %v1356
        %v1358 = vpop.f32.mrb[0].mxu0
        %v1359 = vadd.f32 %v747, %v1358
        %1360 = vmatprep.mubr.f32.mxu0 0.0
        %1361 = vmatmul.mubr.f32.gmra.mrb[0].mxu0 %v1003
        %v1362 = vpop.f32.mrb[0].mxu0
        %v1363 = vadd.f32 %v752, %v1362
        %v1364 = vpop.f32.mrb[0].mxu0
        %v1365 = vadd.f32 %v752, %v1364
        %1366 = vmatprep.mubr.f32.mxu0 0.0
        %1367 = vmatmul.mubr.f32.gmra.mrb[0].mxu0 %v1006
        %v1368 = vpop.f32.mrb[0].mxu0
        %v1369 = vadd.f32 %v757, %v1368
        %v1370 = vpop.f32.mrb[0].mxu0
        %v1371 = vadd.f32 %v757, %v1370
        %1372 = vmatprep.mubr.f32.mxu0 0.0
        %1373 = vmatmul.mubr.f32.gmra.mrb[0].mxu0 %v1009
        %v1374 = vpop.f32.mrb[0].mxu0
        %v1375 = vadd.f32 %v762, %v1374
        %v1376 = vpop.f32.mrb[0].mxu0
        %v1377 = vadd.f32 %v762, %v1376
        %1378 = vmatprep.mubr.f32.mxu0 0.0
        %1379 = vmatmul.mubr.f32.gmra.mrb[0].mxu0 %v1012
        %v1380 = vpop.f32.mrb[0].mxu0
        %v1381 = vadd.f32 %v767, %v1380
        %v1382 = vpop.f32.mrb[0].mxu0
        %v1383 = vadd.f32 %v767, %v1382
        %1384 = vmatprep.mubr.f32.mxu0 0.0
        %1385 = vmatmul.mubr.f32.gmra.mrb[0].mxu0 %v1015
        %v1386 = vpop.f32.mrb[0].mxu0
        %v1387 = vadd.f32 %v772, %v1386
        %v1388 = vpop.f32.mrb[0].mxu0
        %v1389 = vadd.f32 %v772, %v1388
        %1390 = vmatprep.mubr.f32.mxu0 0.0
        %1391 = vmatmul.mubr.f32.gmra.mrb[0].mxu0 %v1018
        %v1392 = vpop.f32.mrb[0].mxu0
        %v1393 = vadd.f32 %v777, %v1392
        %v1394 = vpop.f32.mrb[0].mxu0
        %v1395 = vadd.f32 %v777, %v1394
        %1396 = vmatprep.mubr.f32.mxu0 0.0
        %1397 = vmatmul.mubr.f32.gmra.mrb[0].mxu0 %v1021
        %v1398 = vpop.f32.mrb[0].mxu0
        %v1399 = vadd.f32 %v782, %v1398
        %v1400 = vpop.f32.mrb[0].mxu0
        %v1401 = vadd.f32 %v782, %v1400
        %1402 = vmatprep.mubr.f32.mxu0 0.0
        %1403 = vmatmul.mubr.f32.gmra.mrb[0].mxu0 %v1024
        %v1404 = vpop.f32.mrb[0].mxu0
        %v1405 = vadd.f32 %v787, %v1404
        %v1406 = vpop.f32.mrb[0].mxu0
        %v1407 = vadd.f32 %v787, %v1406
        %1408 = vmatprep.mubr.f32.mxu0 0.0
        %1409 = vmatmul.mubr.f32.gmra.mrb[0].mxu0 %v1027
        %v1410 = vpop.f32.mrb[0].mxu0
        %v1411 = vadd.f32 %v792, %v1410
        %v1412 = vpop.f32.mrb[0].mxu0
        %v1413 = vadd.f32 %v792, %v1412
        %1414 = vmatprep.mubr.f32.mxu0 0.0
        %1415 = vmatmul.mubr.f32.gmra.mrb[0].mxu0 %v1030
        %v1416 = vpop.f32.mrb[0].mxu0
        %v1417 = vadd.f32 %v797, %v1416
        %v1418 = vpop.f32.mrb[0].mxu0
        %v1419 = vadd.f32 %v797, %v1418
        %1420 = vmatprep.mubr.f32.mxu0 0.0
        %1421 = vmatmul.mubr.f32.gmra.mrb[0].mxu0 %v1033
        %v1422 = vpop.f32.mrb[0].mxu0
        %v1423 = vadd.f32 %v802, %v1422
        %v1424 = vpop.f32.mrb[0].mxu0
        %v1425 = vadd.f32 %v802, %v1424
        %1426 = vmatprep.mubr.f32.mxu0 0.0
        %1427 = vmatmul.mubr.f32.gmra.mrb[0].mxu0 %v1036
        %v1428 = vpop.f32.mrb[0].mxu0
        %v1429 = vadd.f32 %v807, %v1428
        %v1430 = vpop.f32.mrb[0].mxu0
        %v1431 = vadd.f32 %v807, %v1430
        %1432 = vmatprep.mubr.f32.mxu0 0.0
        %1433 = vmatmul.mubr.f32.gmra.mrb[0].mxu0 %v1039
        %v1434 = vpop.f32.mrb[0].mxu0
        %v1435 = vadd.f32 %v812, %v1434
        %v1436 = vpop.f32.mrb[0].mxu0
        %v1437 = vadd.f32 %v812, %v1436
        %1438 = vmatprep.mubr.f32.mxu0 0.0
        %1439 = vmatmul.mubr.f32.gmra.mrb[0].mxu0 %v1042
        %v1440 = vpop.f32.mrb[0].mxu0
        %v1441 = vadd.f32 %v817, %v1440
        %v1442 = vpop.f32.mrb[0].mxu0
        %v1443 = vadd.f32 %v817, %v1442
        %1444 = vmatprep.mubr.f32.mxu0 0.0
        %1445 = vmatmul.mubr.f32.gmra.mrb[0].mxu0 %v1045
        %v1446 = vpop.f32.mrb[0].mxu0
        %v1447 = vadd.f32 %v822, %v1446
        %v1448 = vpop.f32.mrb[0].mxu0
        %v1449 = vadd.f32 %v822, %v1448
        %1450 = vmatprep.mubr.f32.mxu0 0.0
        %1451 = vmatmul.mubr.f32.gmra.mrb[0].mxu0 %v1048
        %v1452 = vpop.f32.mrb[0].mxu0
        %v1453 = vadd.f32 %v827, %v1452
        %v1454 = vpop.f32.mrb[0].mxu0
        %v1455 = vadd.f32 %v827, %v1454
        %1456 = vmatprep.mubr.f32.mxu0 0.0
        %1457 = vmatmul.mubr.f32.gmra.mrb[0].mxu0 %v1051
        %v1458 = vpop.f32.mrb[0].mxu0
        %v1459 = vadd.f32 %v832, %v1458
        %v1460 = vpop.f32.mrb[0].mxu0
        %v1461 = vadd.f32 %v832, %v1460
        %1462 = vmatprep.mubr.f32.mxu0 0.0
        %1463 = vmatmul.mubr.f32.gmra.mrb[0].mxu0 %v1054
        %v1464 = vpop.f32.mrb[0].mxu0
        %v1465 = vadd.f32 %v837, %v1464
        %v1466 = vpop.f32.mrb[0].mxu0
        %v1467 = vadd.f32 %v837, %v1466
        %1468 = vmatprep.mubr.f32.mxu0 0.0
        %1469 = vmatmul.mubr.f32.gmra.mrb[0].mxu0 %v1057
        %v1470 = vpop.f32.mrb[0].mxu0
        %v1471 = vadd.f32 %v842, %v1470
        %v1472 = vpop.f32.mrb[0].mxu0
        %v1473 = vadd.f32 %v842, %v1472
        %1474 = vmatprep.mubr.f32.mxu0 0.0
        %1475 = vmatmul.mubr.f32.gmra.mrb[0].mxu0 %v1060
        %v1476 = vpop.f32.mrb[0].mxu0
        %v1477 = vadd.f32 %v847, %v1476
        %v1478 = vpop.f32.mrb[0].mxu0
        %v1479 = vadd.f32 %v847, %v1478
        %1480 = vmatprep.mubr.f32.mxu0 0.0
        %1481 = vmatmul.mubr.f32.gmra.mrb[0].mxu0 %v1063
        %v1482 = vpop.f32.mrb[0].mxu0
        %v1483 = vadd.f32 %v852, %v1482
        %v1484 = vpop.f32.mrb[0].mxu0
        %v1485 = vadd.f32 %v852, %v1484
        %1486 = vmatprep.mubr.f32.mxu0 0.0
        %1487 = vmatmul.mubr.f32.gmra.mrb[0].mxu0 %v1066
        %v1488 = vpop.f32.mrb[0].mxu0
        %v1489 = vadd.f32 %v857, %v1488
        %v1490 = vpop.f32.mrb[0].mxu0
        %v1491 = vadd.f32 %v857, %v1490
        %1492 = vmatprep.mubr.f32.mxu0 0.0
        %1493 = vmatmul.mubr.f32.gmra.mrb[0].mxu0 %v1069
        %v1494 = vpop.f32.mrb[0].mxu0
        %v1495 = vadd.f32 %v862, %v1494
        %v1496 = vpop.f32.mrb[0].mxu0
        %v1497 = vadd.f32 %v862, %v1496
        %1498 = vmatprep.mubr.f32.mxu0 0.0
        %1499 = vmatmul.mubr.f32.gmra.mrb[0].mxu0 %v1072
        %v1500 = vpop.f32.mrb[0].mxu0
        %v1501 = vadd.f32 %v867, %v1500
        %v1502 = vpop.f32.mrb[0].mxu0
        %v1503 = vadd.f32 %v867, %v1502
        %1504 = vmatprep.mubr.f32.mxu0 0.0
        %1505 = vmatmul.mubr.f32.gmra.mrb[0].mxu0 %v1075
        %v1506 = vpop.f32.mrb[0].mxu0
        %v1507 = vadd.f32 %v872, %v1506
        %v1508 = vpop.f32.mrb[0].mxu0
        %v1509 = vadd.f32 %v872, %v1508
        %1510 = vmatprep.mubr.f32.mxu0 0.0
        %1511 = vmatmul.mubr.f32.gmra.mrb[0].mxu0 %v1078
        %v1512 = vpop.f32.mrb[0].mxu0
        %v1513 = vadd.f32 %v877, %v1512
        %v1514 = vpop.f32.mrb[0].mxu0
        %v1515 = vadd.f32 %v877, %v1514
        %1516 = vmatprep.mubr.f32.mxu0 0.0
        %1517 = vmatmul.mubr.f32.gmra.mrb[0].mxu0 %v1081
        %v1518 = vpop.f32.mrb[0].mxu0
        %v1519 = vadd.f32 %v882, %v1518
        %v1520 = vpop.f32.mrb[0].mxu0
        %v1521 = vadd.f32 %v882, %v1520
        %1522 = vmatprep.mubr.f32.mxu0 0.0
        %1523 = vmatmul.mubr.f32.gmra.mrb[0].mxu0 %v1084
        %v1524 = vpop.f32.mrb[0].mxu0
        %v1525 = vadd.f32 %v887, %v1524
        %v1526 = vpop.f32.mrb[0].mxu0
        %v1527 = vadd.f32 %v887, %v1526
        %1528 = vmatprep.mubr.f32.mxu0 0.0
        %1529 = vmatmul.mubr.f32.gmra.mrb[0].mxu0 %v1087
        %v1530 = vpop.f32.mrb[0].mxu0
        %v1531 = vadd.f32 %v892, %v1530
        %v1532 = vpop.f32.mrb[0].mxu0
        %v1533 = vadd.f32 %v892, %v1532
        %1534 = vmatprep.mubr.f32.mxu0 0.0
        %1535 = vmatmul.mubr.f32.gmra.mrb[0].mxu0 %v1090
        %v1536 = vpop.f32.mrb[0].mxu0
        %v1537 = vadd.f32 %v897, %v1536
        %v1538 = vpop.f32.mrb[0].mxu0
        %v1539 = vadd.f32 %v897, %v1538
        %1540 = vdwg.mxu0
        %v1541 = vmax.f32 %v1159, 0.0
        %v1542 = vmax.f32 %v1161, 0.0
        %v1543 = vmax.f32 %v1165, 0.0
        %v1544 = vmax.f32 %v1167, 0.0
        %v1545 = vmax.f32 %v1171, 0.0
        %v1546 = vmax.f32 %v1173, 0.0
        %v1547 = vmax.f32 %v1177, 0.0
        %v1548 = vmax.f32 %v1179, 0.0
        %v1549 = vmax.f32 %v1183, 0.0
        %v1550 = vmax.f32 %v1185, 0.0
        %v1551 = vmax.f32 %v1189, 0.0
        %v1552 = vmax.f32 %v1191, 0.0
        %v1553 = vmax.f32 %v1195, 0.0
        %v1554 = vmax.f32 %v1197, 0.0
        %v1555 = vmax.f32 %v1201, 0.0
        %v1556 = vmax.f32 %v1203, 0.0
        %v1557 = vmax.f32 %v1207, 0.0
        %v1558 = vmax.f32 %v1209, 0.0
        %v1559 = vmax.f32 %v1213, 0.0
        %v1560 = vmax.f32 %v1215, 0.0
        %v1561 = vmax.f32 %v1219, 0.0
        %v1562 = vmax.f32 %v1221, 0.0
        %v1563 = vmax.f32 %v1225, 0.0
        %v1564 = vmax.f32 %v1227, 0.0
        %v1565 = vmax.f32 %v1231, 0.0
        %v1566 = vmax.f32 %v1233, 0.0
        %v1567 = vmax.f32 %v1237, 0.0
        %v1568 = vmax.f32 %v1239, 0.0
        %v1569 = vmax.f32 %v1243, 0.0
        %v1570 = vmax.f32 %v1245, 0.0
        %v1571 = vmax.f32 %v1249, 0.0
        %v1572 = vmax.f32 %v1251, 0.0
        %v1573 = vmax.f32 %v1255, 0.0
        %v1574 = vmax.f32 %v1257, 0.0
        %v1575 = vmax.f32 %v1261, 0.0
        %v1576 = vmax.f32 %v1263, 0.0
        %v1577 = vmax.f32 %v1267, 0.0
        %v1578 = vmax.f32 %v1269, 0.0
        %v1579 = vmax.f32 %v1273, 0.0
        %v1580 = vmax.f32 %v1275, 0.0
        %v1581 = vmax.f32 %v1279, 0.0
        %v1582 = vmax.f32 %v1281, 0.0
        %v1583 = vmax.f32 %v1285, 0.0
        %v1584 = vmax.f32 %v1287, 0.0
        %v1585 = vmax.f32 %v1291, 0.0
        %v1586 = vmax.f32 %v1293, 0.0
        %v1587 = vmax.f32 %v1297, 0.0
        %v1588 = vmax.f32 %v1299, 0.0
        %v1589 = vmax.f32 %v1303, 0.0
        %v1590 = vmax.f32 %v1305, 0.0
        %v1591 = vmax.f32 %v1309, 0.0
        %v1592 = vmax.f32 %v1311, 0.0
        %v1593 = vmax.f32 %v1315, 0.0
        %v1594 = vmax.f32 %v1317, 0.0
        %v1595 = vmax.f32 %v1321, 0.0
        %v1596 = vmax.f32 %v1323, 0.0
        %v1597 = vmax.f32 %v1327, 0.0
        %v1598 = vmax.f32 %v1329, 0.0
        %v1599 = vmax.f32 %v1333, 0.0
        %v1600 = vmax.f32 %v1335, 0.0
        %v1601 = vmax.f32 %v1339, 0.0
        %v1602 = vmax.f32 %v1341, 0.0
        %v1603 = vmax.f32 %v1345, 0.0
        %v1604 = vmax.f32 %v1347, 0.0
        %v1605 = vmax.f32 %v1351, 0.0
        %v1606 = vmax.f32 %v1353, 0.0
        %v1607 = vmax.f32 %v1357, 0.0
        %v1608 = vmax.f32 %v1359, 0.0
        %v1609 = vmax.f32 %v1363, 0.0
        %v1610 = vmax.f32 %v1365, 0.0
        %v1611 = vmax.f32 %v1369, 0.0
        %v1612 = vmax.f32 %v1371, 0.0
        %v1613 = vmax.f32 %v1375, 0.0
        %v1614 = vmax.f32 %v1377, 0.0
        %v1615 = vmax.f32 %v1381, 0.0
        %v1616 = vmax.f32 %v1383, 0.0
        %v1617 = vmax.f32 %v1387, 0.0
        %v1618 = vmax.f32 %v1389, 0.0
        %v1619 = vmax.f32 %v1393, 0.0
        %v1620 = vmax.f32 %v1395, 0.0
        %v1621 = vmax.f32 %v1399, 0.0
        %v1622 = vmax.f32 %v1401, 0.0
        %v1623 = vmax.f32 %v1405, 0.0
        %v1624 = vmax.f32 %v1407, 0.0
        %v1625 = vmax.f32 %v1411, 0.0
        %v1626 = vmax.f32 %v1413, 0.0
        %v1627 = vmax.f32 %v1417, 0.0
        %v1628 = vmax.f32 %v1419, 0.0
        %v1629 = vmax.f32 %v1423, 0.0
        %v1630 = vmax.f32 %v1425, 0.0
        %v1631 = vmax.f32 %v1429, 0.0
        %v1632 = vmax.f32 %v1431, 0.0
        %v1633 = vmax.f32 %v1435, 0.0
        %v1634 = vmax.f32 %v1437, 0.0
        %v1635 = vmax.f32 %v1441, 0.0
        %v1636 = vmax.f32 %v1443, 0.0
        %v1637 = vmax.f32 %v1447, 0.0
        %v1638 = vmax.f32 %v1449, 0.0
        %v1639 = vmax.f32 %v1453, 0.0
        %v1640 = vmax.f32 %v1455, 0.0
        %v1641 = vmax.f32 %v1459, 0.0
        %v1642 = vmax.f32 %v1461, 0.0
        %v1643 = vmax.f32 %v1465, 0.0
        %v1644 = vmax.f32 %v1467, 0.0
        %v1645 = vmax.f32 %v1471, 0.0
        %v1646 = vmax.f32 %v1473, 0.0
        %v1647 = vmax.f32 %v1477, 0.0
        %v1648 = vmax.f32 %v1479, 0.0
        %v1649 = vmax.f32 %v1483, 0.0
        %v1650 = vmax.f32 %v1485, 0.0
        %v1651 = vmax.f32 %v1489, 0.0
        %v1652 = vmax.f32 %v1491, 0.0
        %v1653 = vmax.f32 %v1495, 0.0
        %v1654 = vmax.f32 %v1497, 0.0
        %v1655 = vmax.f32 %v1501, 0.0
        %v1656 = vmax.f32 %v1503, 0.0
        %v1657 = vmax.f32 %v1507, 0.0
        %v1658 = vmax.f32 %v1509, 0.0
        %v1659 = vmax.f32 %v1513, 0.0
        %v1660 = vmax.f32 %v1515, 0.0
        %v1661 = vmax.f32 %v1519, 0.0
        %v1662 = vmax.f32 %v1521, 0.0
        %v1663 = vmax.f32 %v1525, 0.0
        %v1664 = vmax.f32 %v1527, 0.0
        %v1665 = vmax.f32 %v1531, 0.0
        %v1666 = vmax.f32 %v1533, 0.0
        %v1667 = vmax.f32 %v1537, 0.0
        %v1668 = vmax.f32 %v1539, 0.0
        %v1669 = vld [vmem:[%s378] sm:$0xff]
        %v1670 = vld [vmem:[%s378 + $0x8] sm:$0xff]
        %v1671 = vld [vmem:[%s378 + $0x10] sm:$0xff]
        %v1672 = vld [vmem:[%s378 + $0x18] sm:$0xff]
        %v1673 = vld [vmem:[%s378 + $0x20] sm:$0xff]
        %v1674 = vld [vmem:[%s378 + $0x28] sm:$0xff]
        %v1675 = vld [vmem:[%s378 + $0x30] sm:$0xff]
        %v1676 = vld [vmem:[%s378 + $0x38] sm:$0xff]
        %v1677 = vld [vmem:[%s378 + $0x40] sm:$0xff]
        %v1678 = vld [vmem:[%s378 + $0x48] sm:$0xff]
        %v1679 = vld [vmem:[%s378 + $0x50] sm:$0xff]
        %v1680 = vld [vmem:[%s378 + $0x58] sm:$0xff]
        %v1681 = vld [vmem:[%s378 + $0x60] sm:$0xff]
        %v1682 = vld [vmem:[%s378 + $0x68] sm:$0xff]
        %v1683 = vld [vmem:[%s378 + $0x70] sm:$0xff]
        %v1684 = vld [vmem:[%s378 + $0x78] sm:$0xff]
        %v1685 = vld [vmem:[%s378 + $0x80] sm:$0xff]
        %v1686 = vld [vmem:[%s378 + $0x88] sm:$0xff]
        %v1687 = vld [vmem:[%s378 + $0x90] sm:$0xff]
        %v1688 = vld [vmem:[%s378 + $0x98] sm:$0xff]
        %v1689 = vld [vmem:[%s378 + $0xa0] sm:$0xff]
        %v1690 = vld [vmem:[%s378 + $0xa8] sm:$0xff]
        %v1691 = vld [vmem:[%s378 + $0xb0] sm:$0xff]
        %v1692 = vld [vmem:[%s378 + $0xb8] sm:$0xff]
        %v1693 = vld [vmem:[%s378 + $0xc0] sm:$0xff]
        %v1694 = vld [vmem:[%s378 + $0xc8] sm:$0xff]
        %v1695 = vld [vmem:[%s378 + $0xd0] sm:$0xff]
        %v1696 = vld [vmem:[%s378 + $0xd8] sm:$0xff]
        %v1697 = vld [vmem:[%s378 + $0xe0] sm:$0xff]
        %v1698 = vld [vmem:[%s378 + $0xe8] sm:$0xff]
        %v1699 = vld [vmem:[%s378 + $0xf0] sm:$0xff]
        %v1700 = vld [vmem:[%s378 + $0xf8] sm:$0xff]
        %v1701 = vld [vmem:[%s378 + $0x100] sm:$0xff]
        %v1702 = vld [vmem:[%s378 + $0x108] sm:$0xff]
        %v1703 = vld [vmem:[%s378 + $0x110] sm:$0xff]
        %v1704 = vld [vmem:[%s378 + $0x118] sm:$0xff]
        %v1705 = vld [vmem:[%s378 + $0x120] sm:$0xff]
        %v1706 = vld [vmem:[%s378 + $0x128] sm:$0xff]
        %v1707 = vld [vmem:[%s378 + $0x130] sm:$0xff]
        %v1708 = vld [vmem:[%s378 + $0x138] sm:$0xff]
        %v1709 = vld [vmem:[%s378 + $0x140] sm:$0xff]
        %v1710 = vld [vmem:[%s378 + $0x148] sm:$0xff]
        %v1711 = vld [vmem:[%s378 + $0x150] sm:$0xff]
        %v1712 = vld [vmem:[%s378 + $0x158] sm:$0xff]
        %v1713 = vld [vmem:[%s378 + $0x160] sm:$0xff]
        %v1714 = vld [vmem:[%s378 + $0x168] sm:$0xff]
        %v1715 = vld [vmem:[%s378 + $0x170] sm:$0xff]
        %v1716 = vld [vmem:[%s378 + $0x178] sm:$0xff]
        %v1717 = vld [vmem:[%s378 + $0x180] sm:$0xff]
        %v1718 = vld [vmem:[%s378 + $0x188] sm:$0xff]
        %v1719 = vld [vmem:[%s378 + $0x190] sm:$0xff]
        %v1720 = vld [vmem:[%s378 + $0x198] sm:$0xff]
        %v1721 = vld [vmem:[%s378 + $0x1a0] sm:$0xff]
        %v1722 = vld [vmem:[%s378 + $0x1a8] sm:$0xff]
        %v1723 = vld [vmem:[%s378 + $0x1b0] sm:$0xff]
        %v1724 = vld [vmem:[%s378 + $0x1b8] sm:$0xff]
        %v1725 = vld [vmem:[%s378 + $0x1c0] sm:$0xff]
        %v1726 = vld [vmem:[%s378 + $0x1c8] sm:$0xff]
        %v1727 = vld [vmem:[%s378 + $0x1d0] sm:$0xff]
        %v1728 = vld [vmem:[%s378 + $0x1d8] sm:$0xff]
        %v1729 = vld [vmem:[%s378 + $0x1e0] sm:$0xff]
        %v1730 = vld [vmem:[%s378 + $0x1e8] sm:$0xff]
        %v1731 = vld [vmem:[%s378 + $0x1f0] sm:$0xff]
        %v1732 = vld [vmem:[%s378 + $0x1f8] sm:$0xff]
        %v1733 = vld [vmem:[%s378 + $0x200] sm:$0xff]
        %v1734 = vld [vmem:[%s378 + $0x208] sm:$0xff]
        %v1735 = vld [vmem:[%s378 + $0x210] sm:$0xff]
        %v1736 = vld [vmem:[%s378 + $0x218] sm:$0xff]
        %v1737 = vld [vmem:[%s378 + $0x220] sm:$0xff]
        %v1738 = vld [vmem:[%s378 + $0x228] sm:$0xff]
        %v1739 = vld [vmem:[%s378 + $0x230] sm:$0xff]
        %v1740 = vld [vmem:[%s378 + $0x238] sm:$0xff]
        %v1741 = vld [vmem:[%s378 + $0x240] sm:$0xff]
        %v1742 = vld [vmem:[%s378 + $0x248] sm:$0xff]
        %v1743 = vld [vmem:[%s378 + $0x250] sm:$0xff]
        %v1744 = vld [vmem:[%s378 + $0x258] sm:$0xff]
        %v1745 = vld [vmem:[%s378 + $0x260] sm:$0xff]
        %v1746 = vld [vmem:[%s378 + $0x268] sm:$0xff]
        %v1747 = vld [vmem:[%s378 + $0x270] sm:$0xff]
        %v1748 = vld [vmem:[%s378 + $0x278] sm:$0xff]
        %v1749 = vld [vmem:[%s378 + $0x280] sm:$0xff]
        %v1750 = vld [vmem:[%s378 + $0x288] sm:$0xff]
        %v1751 = vld [vmem:[%s378 + $0x290] sm:$0xff]
        %v1752 = vld [vmem:[%s378 + $0x298] sm:$0xff]
        %v1753 = vld [vmem:[%s378 + $0x2a0] sm:$0xff]
        %v1754 = vld [vmem:[%s378 + $0x2a8] sm:$0xff]
        %v1755 = vld [vmem:[%s378 + $0x2b0] sm:$0xff]
        %v1756 = vld [vmem:[%s378 + $0x2b8] sm:$0xff]
        %v1757 = vld [vmem:[%s378 + $0x2c0] sm:$0xff]
        %v1758 = vld [vmem:[%s378 + $0x2c8] sm:$0xff]
        %v1759 = vld [vmem:[%s378 + $0x2d0] sm:$0xff]
        %v1760 = vld [vmem:[%s378 + $0x2d8] sm:$0xff]
        %v1761 = vld [vmem:[%s378 + $0x2e0] sm:$0xff]
        %v1762 = vld [vmem:[%s378 + $0x2e8] sm:$0xff]
        %v1763 = vld [vmem:[%s378 + $0x2f0] sm:$0xff]
        %v1764 = vld [vmem:[%s378 + $0x2f8] sm:$0xff]
        %v1765 = vld [vmem:[%s378 + $0x300] sm:$0xff]
        %v1766 = vld [vmem:[%s378 + $0x308] sm:$0xff]
        %v1767 = vld [vmem:[%s378 + $0x310] sm:$0xff]
        %v1768 = vld [vmem:[%s378 + $0x318] sm:$0xff]
        %v1769 = vld [vmem:[%s378 + $0x320] sm:$0xff]
        %v1770 = vld [vmem:[%s378 + $0x328] sm:$0xff]
        %v1771 = vld [vmem:[%s378 + $0x330] sm:$0xff]
        %v1772 = vld [vmem:[%s378 + $0x338] sm:$0xff]
        %v1773 = vld [vmem:[%s378 + $0x340] sm:$0xff]
        %v1774 = vld [vmem:[%s378 + $0x348] sm:$0xff]
        %v1775 = vld [vmem:[%s378 + $0x350] sm:$0xff]
        %v1776 = vld [vmem:[%s378 + $0x358] sm:$0xff]
        %v1777 = vld [vmem:[%s378 + $0x360] sm:$0xff]
        %v1778 = vld [vmem:[%s378 + $0x368] sm:$0xff]
        %v1779 = vld [vmem:[%s378 + $0x370] sm:$0xff]
        %v1780 = vld [vmem:[%s378 + $0x378] sm:$0xff]
        %v1781 = vld [vmem:[%s378 + $0x380] sm:$0xff]
        %v1782 = vld [vmem:[%s378 + $0x388] sm:$0xff]
        %v1783 = vld [vmem:[%s378 + $0x390] sm:$0xff]
        %v1784 = vld [vmem:[%s378 + $0x398] sm:$0xff]
        %v1785 = vld [vmem:[%s378 + $0x3a0] sm:$0xff]
        %v1786 = vld [vmem:[%s378 + $0x3a8] sm:$0xff]
        %v1787 = vld [vmem:[%s378 + $0x3b0] sm:$0xff]
        %v1788 = vld [vmem:[%s378 + $0x3b8] sm:$0xff]
        %v1789 = vld [vmem:[%s378 + $0x3c0] sm:$0xff]
        %v1790 = vld [vmem:[%s378 + $0x3c8] sm:$0xff]
        %v1791 = vld [vmem:[%s378 + $0x3d0] sm:$0xff]
        %v1792 = vld [vmem:[%s378 + $0x3d8] sm:$0xff]
        %v1793 = vld [vmem:[%s378 + $0x3e0] sm:$0xff]
        %v1794 = vld [vmem:[%s378 + $0x3e8] sm:$0xff]
        %v1795 = vld [vmem:[%s378 + $0x3f0] sm:$0xff]
        %v1796 = vld [vmem:[%s378 + $0x3f8] sm:$0xff]
        %v1797 = vadd.f32 %v1541, %v1669
        %v1798 = vadd.f32 %v1542, %v1670
        %v1799 = vadd.f32 %v1543, %v1671
        %v1800 = vadd.f32 %v1544, %v1672
        %v1801 = vadd.f32 %v1545, %v1673
        %v1802 = vadd.f32 %v1546, %v1674
        %v1803 = vadd.f32 %v1547, %v1675
        %v1804 = vadd.f32 %v1548, %v1676
        %v1805 = vadd.f32 %v1549, %v1677
        %v1806 = vadd.f32 %v1550, %v1678
        %v1807 = vadd.f32 %v1551, %v1679
        %v1808 = vadd.f32 %v1552, %v1680
        %v1809 = vadd.f32 %v1553, %v1681
        %v1810 = vadd.f32 %v1554, %v1682
        %v1811 = vadd.f32 %v1555, %v1683
        %v1812 = vadd.f32 %v1556, %v1684
        %v1813 = vadd.f32 %v1557, %v1685
        %v1814 = vadd.f32 %v1558, %v1686
        %v1815 = vadd.f32 %v1559, %v1687
        %v1816 = vadd.f32 %v1560, %v1688
        %v1817 = vadd.f32 %v1561, %v1689
        %v1818 = vadd.f32 %v1562, %v1690
        %v1819 = vadd.f32 %v1563, %v1691
        %v1820 = vadd.f32 %v1564, %v1692
        %v1821 = vadd.f32 %v1565, %v1693
        %v1822 = vadd.f32 %v1566, %v1694
        %v1823 = vadd.f32 %v1567, %v1695
        %v1824 = vadd.f32 %v1568, %v1696
        %v1825 = vadd.f32 %v1569, %v1697
        %v1826 = vadd.f32 %v1570, %v1698
        %v1827 = vadd.f32 %v1571, %v1699
        %v1828 = vadd.f32 %v1572, %v1700
        %v1829 = vadd.f32 %v1573, %v1701
        %v1830 = vadd.f32 %v1574, %v1702
        %v1831 = vadd.f32 %v1575, %v1703
        %v1832 = vadd.f32 %v1576, %v1704
        %v1833 = vadd.f32 %v1577, %v1705
        %v1834 = vadd.f32 %v1578, %v1706
        %v1835 = vadd.f32 %v1579, %v1707
        %v1836 = vadd.f32 %v1580, %v1708
        %v1837 = vadd.f32 %v1581, %v1709
        %v1838 = vadd.f32 %v1582, %v1710
        %v1839 = vadd.f32 %v1583, %v1711
        %v1840 = vadd.f32 %v1584, %v1712
        %v1841 = vadd.f32 %v1585, %v1713
        %v1842 = vadd.f32 %v1586, %v1714
        %v1843 = vadd.f32 %v1587, %v1715
        %v1844 = vadd.f32 %v1588, %v1716
        %v1845 = vadd.f32 %v1589, %v1717
        %v1846 = vadd.f32 %v1590, %v1718
        %v1847 = vadd.f32 %v1591, %v1719
        %v1848 = vadd.f32 %v1592, %v1720
        %v1849 = vadd.f32 %v1593, %v1721
        %v1850 = vadd.f32 %v1594, %v1722
        %v1851 = vadd.f32 %v1595, %v1723
        %v1852 = vadd.f32 %v1596, %v1724
        %v1853 = vadd.f32 %v1597, %v1725
        %v1854 = vadd.f32 %v1598, %v1726
        %v1855 = vadd.f32 %v1599, %v1727
        %v1856 = vadd.f32 %v1600, %v1728
        %v1857 = vadd.f32 %v1601, %v1729
        %v1858 = vadd.f32 %v1602, %v1730
        %v1859 = vadd.f32 %v1603, %v1731
        %v1860 = vadd.f32 %v1604, %v1732
        %v1861 = vadd.f32 %v1605, %v1733
        %v1862 = vadd.f32 %v1606, %v1734
        %v1863 = vadd.f32 %v1607, %v1735
        %v1864 = vadd.f32 %v1608, %v1736
        %v1865 = vadd.f32 %v1609, %v1737
        %v1866 = vadd.f32 %v1610, %v1738
        %v1867 = vadd.f32 %v1611, %v1739
        %v1868 = vadd.f32 %v1612, %v1740
        %v1869 = vadd.f32 %v1613, %v1741
        %v1870 = vadd.f32 %v1614, %v1742
        %v1871 = vadd.f32 %v1615, %v1743
        %v1872 = vadd.f32 %v1616, %v1744
        %v1873 = vadd.f32 %v1617, %v1745
        %v1874 = vadd.f32 %v1618, %v1746
        %v1875 = vadd.f32 %v1619, %v1747
        %v1876 = vadd.f32 %v1620, %v1748
        %v1877 = vadd.f32 %v1621, %v1749
        %v1878 = vadd.f32 %v1622, %v1750
        %v1879 = vadd.f32 %v1623, %v1751
        %v1880 = vadd.f32 %v1624, %v1752
        %v1881 = vadd.f32 %v1625, %v1753
        %v1882 = vadd.f32 %v1626, %v1754
        %v1883 = vadd.f32 %v1627, %v1755
        %v1884 = vadd.f32 %v1628, %v1756
        %v1885 = vadd.f32 %v1629, %v1757
        %v1886 = vadd.f32 %v1630, %v1758
        %v1887 = vadd.f32 %v1631, %v1759
        %v1888 = vadd.f32 %v1632, %v1760
        %v1889 = vadd.f32 %v1633, %v1761
        %v1890 = vadd.f32 %v1634, %v1762
        %v1891 = vadd.f32 %v1635, %v1763
        %v1892 = vadd.f32 %v1636, %v1764
        %v1893 = vadd.f32 %v1637, %v1765
        %v1894 = vadd.f32 %v1638, %v1766
        %v1895 = vadd.f32 %v1639, %v1767
        %v1896 = vadd.f32 %v1640, %v1768
        %v1897 = vadd.f32 %v1641, %v1769
        %v1898 = vadd.f32 %v1642, %v1770
        %v1899 = vadd.f32 %v1643, %v1771
        %v1900 = vadd.f32 %v1644, %v1772
        %v1901 = vadd.f32 %v1645, %v1773
        %v1902 = vadd.f32 %v1646, %v1774
        %v1903 = vadd.f32 %v1647, %v1775
        %v1904 = vadd.f32 %v1648, %v1776
        %v1905 = vadd.f32 %v1649, %v1777
        %v1906 = vadd.f32 %v1650, %v1778
        %v1907 = vadd.f32 %v1651, %v1779
        %v1908 = vadd.f32 %v1652, %v1780
        %v1909 = vadd.f32 %v1653, %v1781
        %v1910 = vadd.f32 %v1654, %v1782
        %v1911 = vadd.f32 %v1655, %v1783
        %v1912 = vadd.f32 %v1656, %v1784
        %v1913 = vadd.f32 %v1657, %v1785
        %v1914 = vadd.f32 %v1658, %v1786
        %v1915 = vadd.f32 %v1659, %v1787
        %v1916 = vadd.f32 %v1660, %v1788
        %v1917 = vadd.f32 %v1661, %v1789
        %v1918 = vadd.f32 %v1662, %v1790
        %v1919 = vadd.f32 %v1663, %v1791
        %v1920 = vadd.f32 %v1664, %v1792
        %v1921 = vadd.f32 %v1665, %v1793
        %v1922 = vadd.f32 %v1666, %v1794
        %v1923 = vadd.f32 %v1667, %v1795
        %v1924 = vadd.f32 %v1668, %v1796
        %v1925 = vld [vmem:[%s5] sm:$0xff]
        %v1926 = vld [vmem:[%s5 + $0x8] sm:$0xff]
        %v1927 = vld [vmem:[%s5 + $0x10] sm:$0xff]
        %v1928 = vld [vmem:[%s5 + $0x18] sm:$0xff]
        %v1929 = vld [vmem:[%s6] sm:$0xff]
        %1931 = vset.pattern.permute.xlu0 0
        %1932 = vperm.xlu0 %1931, %v1929
        %v1933 = vpop.permute.xlu0 %1932
        %1935 = vmatprep.subr.mxu0 %v1798
        %1936 = vmatpush1.msra.mxu0 %v1797
        %1937 = vmatprep.subr.mxu0 %v1800
        %1938 = vmatpush1.msra.mxu0 %v1799
        %1939 = vmatprep.subr.mxu0 %v1802
        %1940 = vmatpush1.msra.mxu0 %v1801
        %1941 = vmatprep.subr.mxu0 %v1804
        %1942 = vmatpush1.msra.mxu0 %v1803
        %1943 = vmatprep.subr.mxu0 %v1806
        %1944 = vmatpush1.msra.mxu0 %v1805
        %1945 = vmatprep.subr.mxu0 %v1808
        %1946 = vmatpush1.msra.mxu0 %v1807
        %1947 = vmatprep.subr.mxu0 %v1810
        %1948 = vmatpush1.msra.mxu0 %v1809
        %1949 = vmatprep.subr.mxu0 %v1812
        %1950 = vmatpush1.msra.mxu0 %v1811
        %1951 = vmatprep.subr.mxu0 %v1814
        %1952 = vmatpush1.msra.mxu0 %v1813
        %1953 = vmatprep.subr.mxu0 %v1816
        %1954 = vmatpush1.msra.mxu0 %v1815
        %1955 = vmatprep.subr.mxu0 %v1818
        %1956 = vmatpush1.msra.mxu0 %v1817
        %1957 = vmatprep.subr.mxu0 %v1820
        %1958 = vmatpush1.msra.mxu0 %v1819
        %1959 = vmatprep.subr.mxu0 %v1822
        %1960 = vmatpush1.msra.mxu0 %v1821
        %1961 = vmatprep.subr.mxu0 %v1824
        %1962 = vmatpush1.msra.mxu0 %v1823
        %1963 = vmatprep.subr.mxu0 %v1826
        %1964 = vmatpush1.msra.mxu0 %v1825
        %1965 = vmatprep.subr.mxu0 %v1828
        %1966 = vmatpush1.msra.mxu0 %v1827
        %1967 = vmatprep.subr.mxu0 %v1830
        %1968 = vmatpush1.msra.mxu0 %v1829
        %1969 = vmatprep.subr.mxu0 %v1832
        %1970 = vmatpush1.msra.mxu0 %v1831
        %1971 = vmatprep.subr.mxu0 %v1834
        %1972 = vmatpush1.msra.mxu0 %v1833
        %1973 = vmatprep.subr.mxu0 %v1836
        %1974 = vmatpush1.msra.mxu0 %v1835
        %1975 = vmatprep.subr.mxu0 %v1838
        %1976 = vmatpush1.msra.mxu0 %v1837
        %1977 = vmatprep.subr.mxu0 %v1840
        %1978 = vmatpush1.msra.mxu0 %v1839
        %1979 = vmatprep.subr.mxu0 %v1842
        %1980 = vmatpush1.msra.mxu0 %v1841
        %1981 = vmatprep.subr.mxu0 %v1844
        %1982 = vmatpush1.msra.mxu0 %v1843
        %1983 = vmatprep.subr.mxu0 %v1846
        %1984 = vmatpush1.msra.mxu0 %v1845
        %1985 = vmatprep.subr.mxu0 %v1848
        %1986 = vmatpush1.msra.mxu0 %v1847
        %1987 = vmatprep.subr.mxu0 %v1850
        %1988 = vmatpush1.msra.mxu0 %v1849
        %1989 = vmatprep.subr.mxu0 %v1852
        %1990 = vmatpush1.msra.mxu0 %v1851
        %1991 = vmatprep.subr.mxu0 %v1854
        %1992 = vmatpush1.msra.mxu0 %v1853
        %1993 = vmatprep.subr.mxu0 %v1856
        %1994 = vmatpush1.msra.mxu0 %v1855
        %1995 = vmatprep.subr.mxu0 %v1858
        %1996 = vmatpush1.msra.mxu0 %v1857
        %1997 = vmatprep.subr.mxu0 %v1860
        %1998 = vmatpush1.msra.mxu0 %v1859
        %1999 = vmatprep.mubr.f32.mxu0 %v1926
        %2000 = vmatmul.mubr.f32.gmra.mrb[0].mxu0 %v1925
        %v2001 = vpop.f32.mrb[0].mxu0
        %v2002 = vadd.f32 %v1933, %v2001
        %v2003 = vpop.f32.mrb[0].mxu0
        %v2004 = vadd.f32 %v1933, %v2003
        %2005 = vdwg.mxu0
        %2006 = vmatprep.subr.mxu0 %v1862
        %2007 = vmatpush1.msra.mxu0 %v1861
        %2008 = vmatprep.subr.mxu0 %v1864
        %2009 = vmatpush1.msra.mxu0 %v1863
        %2010 = vmatprep.subr.mxu0 %v1866
        %2011 = vmatpush1.msra.mxu0 %v1865
        %2012 = vmatprep.subr.mxu0 %v1868
        %2013 = vmatpush1.msra.mxu0 %v1867
        %2014 = vmatprep.subr.mxu0 %v1870
        %2015 = vmatpush1.msra.mxu0 %v1869
        %2016 = vmatprep.subr.mxu0 %v1872
        %2017 = vmatpush1.msra.mxu0 %v1871
        %2018 = vmatprep.subr.mxu0 %v1874
        %2019 = vmatpush1.msra.mxu0 %v1873
        %2020 = vmatprep.subr.mxu0 %v1876
        %2021 = vmatpush1.msra.mxu0 %v1875
        %2022 = vmatprep.subr.mxu0 %v1878
        %2023 = vmatpush1.msra.mxu0 %v1877
        %2024 = vmatprep.subr.mxu0 %v1880
        %2025 = vmatpush1.msra.mxu0 %v1879
        %2026 = vmatprep.subr.mxu0 %v1882
        %2027 = vmatpush1.msra.mxu0 %v1881
        %2028 = vmatprep.subr.mxu0 %v1884
        %2029 = vmatpush1.msra.mxu0 %v1883
        %2030 = vmatprep.subr.mxu0 %v1886
        %2031 = vmatpush1.msra.mxu0 %v1885
        %2032 = vmatprep.subr.mxu0 %v1888
        %2033 = vmatpush1.msra.mxu0 %v1887
        %2034 = vmatprep.subr.mxu0 %v1890
        %2035 = vmatpush1.msra.mxu0 %v1889
        %2036 = vmatprep.subr.mxu0 %v1892
        %2037 = vmatpush1.msra.mxu0 %v1891
        %2038 = vmatprep.subr.mxu0 %v1894
        %2039 = vmatpush1.msra.mxu0 %v1893
        %2040 = vmatprep.subr.mxu0 %v1896
        %2041 = vmatpush1.msra.mxu0 %v1895
        %2042 = vmatprep.subr.mxu0 %v1898
        %2043 = vmatpush1.msra.mxu0 %v1897
        %2044 = vmatprep.subr.mxu0 %v1900
        %2045 = vmatpush1.msra.mxu0 %v1899
        %2046 = vmatprep.subr.mxu0 %v1902
        %2047 = vmatpush1.msra.mxu0 %v1901
        %2048 = vmatprep.subr.mxu0 %v1904
        %2049 = vmatpush1.msra.mxu0 %v1903
        %2050 = vmatprep.subr.mxu0 %v1906
        %2051 = vmatpush1.msra.mxu0 %v1905
        %2052 = vmatprep.subr.mxu0 %v1908
        %2053 = vmatpush1.msra.mxu0 %v1907
        %2054 = vmatprep.subr.mxu0 %v1910
        %2055 = vmatpush1.msra.mxu0 %v1909
        %2056 = vmatprep.subr.mxu0 %v1912
        %2057 = vmatpush1.msra.mxu0 %v1911
        %2058 = vmatprep.subr.mxu0 %v1914
        %2059 = vmatpush1.msra.mxu0 %v1913
        %2060 = vmatprep.subr.mxu0 %v1916
        %2061 = vmatpush1.msra.mxu0 %v1915
        %2062 = vmatprep.subr.mxu0 %v1918
        %2063 = vmatpush1.msra.mxu0 %v1917
        %2064 = vmatprep.subr.mxu0 %v1920
        %2065 = vmatpush1.msra.mxu0 %v1919
        %2066 = vmatprep.subr.mxu0 %v1922
        %2067 = vmatpush1.msra.mxu0 %v1921
        %2068 = vmatprep.subr.mxu0 %v1924
        %2069 = vmatpush1.msra.mxu0 %v1923
        %2070 = vmatprep.mubr.f32.mxu0 %v1928
        %2071 = vmatmul.mubr.f32.gmra.mrb[0].mxu0 %v1927
        %v2072 = vpop.f32.mrb[0].mxu0
        %v2073 = vadd.f32 %v2002, %v2072
        %v2074 = vpop.f32.mrb[0].mxu0
        %v2075 = vadd.f32 %v2004, %v2074
        %2076 = vdwg.mxu0
        %v2077 = vld [vmem:[%s435] sm:$0x3]
        %v2079 = vlaneseq
        %v2080 = vshrl.u32 %v2079, 7
        %v2081 = vsub.s32 0, %v2080
        %v2082 = vrot.slane %v2077, %v2081
        %v2083 = vlaneseq
        %v2084 = vshrl.u32 %v2083, 7
        %v2085 = vsub.s32 1, %v2084
        %v2086 = vrot.slane %v2077, %v2085
        %v2089 = vmul.f32 %v2073, %v2082
        %v2090 = vmul.f32 %v2075, %v2086
        %2091 = vst [vmem:[%s420] sm:$0xff] %v2089
        %2092 = vst [vmem:[%s420 + $0x8] sm:$0xff] %v2090
        %p2093 = scmp.eq.s32.totalorder %s31, 0
        // Predicated region
        $region76: #{tpu_custom_call.1} parent=66 // pred_check
          %p2094 = pneg %p2093
        $region77: #{tpu_custom_call.1} parent=66 // pred_check_branch
          %2096 = sbr.rel (%p2094) target = $region79
        $region78: #{tpu_custom_call.1} parent=66 // pred_region
          %vm2097 = vcmask 7168
          %2098 = vst.msk [vmem:[%s442] sm:$0xff] %vm2097, 0.0
        $region79: #{tpu_custom_call.1} parent=66 // pred_fallthru
          _
        %v2099 = vld [vmem:[%s442] sm:$0xff]
        %v2100 = vadd.f32 %v2089, %v2090
        %2101 = vadd.xlane.f32.xlu0 %v2100
        %v2102 = vpop.xlane.xlu0 %2101
        %v2103 = vadd.f32 %v2099, %v2102
        %vm2104 = vcmask 7168
        %2105 = vst.msk [vmem:[%s442] sm:$0xff] %vm2104, %v2103
        %s2106 = sand.u32 %s214, 1
        %s2107 = scalar_lea.sflag [#allocation5], %s2106
        %s2108 = sand.u32 %s214, 1
        %s2109 = smul.addr %s2108, 16
        %s2110 = scalar_lea.vmem [#allocation6], %s2109
        %p2111 = scmp.lt.s32.totalorder %s30, 1
        %s2112 = scalar_select %p2111, %s30, 1
        %s2113 = smul.addr %s2112, 8
        %s2114 = scalar_lea.vmem %s8, %s2113
        // Predicated region
        $region80: #{tpu_custom_call.1} parent=66 // pred_check
          %p2115 = pneg %p224
        $region81: #{tpu_custom_call.1} parent=66 // pred_check_branch
          %2117 = sbr.rel (%p2115) target = $region83
        $region82: #{tpu_custom_call.1} parent=66 // pred_region
          %s2118 = smul.u32 2, %s31
          %s2120 = ssub.s32 256, 256
          %2121 = vsyncadd %s2107, %s2120
          %s2122 = smul.addr %s30, 4
          %s2123 = sadd.s32 %s2118, %s2122
          %s2124 = smul.addr %s2123, 128
          %s2125 = scalar_lea.hbm %s7, %s2124
          %s2127 = sshll.u32 %s2110, 4
          %s2128 = int_to_ptr.vmem [resolvable:$true] %s2127
          %2130 = dma.vmem_to_hbm [thread:$0]  %s2128, 256, %s2125, %s2107
        $region83: #{tpu_custom_call.1} parent=66 // pred_fallthru
          _
        // Predicated region
        $region84: #{tpu_custom_call.1} parent=66 // pred_check
          %p2131 = pneg %p250
        $region85: #{tpu_custom_call.1} parent=66 // pred_check_branch
          %2133 = sbr.rel (%p2131) target = $region87
        $region86: #{tpu_custom_call.1} parent=66 // pred_region
          _
        $region87: #{tpu_custom_call.1} parent=66 // pred_fallthru
          _
      $region67: #{tpu_custom_call.1} parent=5 // pred_fallthru
        _
      %p2134 = scmp.le.s32.totalorder 2, %s21
      // Predicated region
      $region88: #{tpu_custom_call.1} parent=5 // pred_check
        %p2135 = pneg %p2134
      $region89: #{tpu_custom_call.1} parent=5 // pred_check_branch
        %2137 = sbr.rel (%p2135) target = $region91
      $region90: #{tpu_custom_call.1} parent=5 // pred_region
        %s2138 = ssub.s32 %s21, 2
        // Predicated region
        $region92: #{tpu_custom_call.1} parent=90 // pred_check
          %p2139 = pneg %p230
        $region93: #{tpu_custom_call.1} parent=90 // pred_check_branch
          %2141 = sbr.rel (%p2139) target = $region95
        $region94: #{tpu_custom_call.1} parent=90 // pred_region
          %s2142 = sand.u32 %s215, 1
          %s2143 = scalar_lea.sflag [#allocation5], %s2142
          %s2144 = sand.u32 %s215, 1
          %s2145 = smul.addr %s2144, 16
          %s2146 = scalar_lea.vmem [#allocation6], %s2145
          %2147 = dma.done %s2143, 256
        $region95: #{tpu_custom_call.1} parent=90 // pred_fallthru
          _
        // Predicated region
        $region96: #{tpu_custom_call.1} parent=90 // pred_check
          %p2148 = pneg %p256
        $region97: #{tpu_custom_call.1} parent=90 // pred_check_branch
          %2150 = sbr.rel (%p2148) target = $region99
        $region98: #{tpu_custom_call.1} parent=90 // pred_region
          %p2151 = scmp.lt.s32.totalorder %s32, 1
          %s2152 = scalar_select %p2151, %s32, 1
          %s2153 = smul.addr %s2152, 8
          %s2154 = scalar_lea.vmem %s8, %s2153
        $region99: #{tpu_custom_call.1} parent=90 // pred_fallthru
          _
      $region91: #{tpu_custom_call.1} parent=5 // pred_fallthru
        _
    $region6: #{tpu_custom_call.1} parent=1 // loop_footer
      %s25 = sadd.s32 1, %s21
    $region7: #{tpu_custom_call.1} parent=1 // loop_footer_branch
      %20 = sbr.rel target = $region3
    $region8: #{tpu_custom_call.1} parent=1 // loop_exit
      _
    %2155 = vsyncpa [#allocation4], 1
    %s2156 = scalar_lea.sflag [#allocation4], 1
    %2157 = vsyncpa %s2156, 1
    %2158 = vsyncpa [#allocation5], 1
    %s2159 = scalar_lea.sflag [#allocation5], 1
    %2160 = vsyncpa %s2159, 1

</llo_original>
